<compile_context>
chip_gen: v7x
topology: tpu7x:2x2x1
jax: 0.10.0
libtpu: 0.0.40
codegen_flags: <defaults>
</compile_context>

<pallas_src>
import numpy as np
import jax
import jax.numpy as jnp
from jax.experimental import pallas as pl
from jax.experimental.pallas import tpu as pltpu


def _make_dense_block_kernel(C0, C_pad, C_final, g, L, H, W):
    """Fused DenseBlock kernel for static (C0, padded channels, growth g, L layers, H, W)."""
    Hp, Wp = H + 2, W + 2
    S = Hp * Wp                       # flattened padded spatial size (lane axis)
    M = (H - 1) * Wp + W              # number of GEMM columns per layer
    taps = [ky * Wp + kx for ky in range(3) for kx in range(3)]
    # Static bound check: the furthest tap read is (M-1) + 2*Wp + 2 == S-1 (VMEM refs
    # have no runtime bounds check, so guard against layout changes here).
    assert M + 2 * Wp + 2 <= S, (M, Wp, S)

    def kernel(x_ref, w_ref, b_ref, o_ref, feat, out_sc):
        # feat: (C_pad, S) slab -- channels on sublanes, flattened padded spatial on lanes.
        # Zero it (zero-padding border + not-yet-written channels), then drop in the input.
        feat[...] = jnp.zeros((C_pad, S), jnp.float32)
        feat[0:C0, :] = x_ref[0]

        # Interior mask over the M GEMM columns.  Column m writes padded-flat index
        # m + Wp + 1; that pixel is interior iff (m mod Wp) < W.  Built with iota +
        # compares (no vector div/mod, no DMA), hoisted out of the layer loop.
        lane = jax.lax.broadcasted_iota(jnp.int32, (1, M), 1)
        interior = lane < W
        for i in range(1, H):
            interior = interior | ((lane >= i * Wp) & (lane < i * Wp + W))
        mask = interior.astype(jnp.float32)                       # (1, M)

        for l in range(L):
            cin = C0 + l * g
            # im2col: 9 statically shifted lane-slices of the slab, stacked on sublanes.
            patches = jnp.concatenate([feat[:, d:d + M] for d in taps], axis=0)
            # One MXU contraction per layer (weights are zero for channels >= cin and
            # those slab channels are still zero, so this equals the exact 3x3 conv
            # over the first cin channels).
            acc = jnp.dot(w_ref[l], patches, preferred_element_type=jnp.float32)
            # bias + ReLU; mask zeroes the border columns so later layers still see
            # correct zero padding in the freshly written channels.
            y = jnp.maximum(acc + b_ref[l], 0.0) * mask           # (g, M)
            feat[cin:cin + g, Wp + 1:Wp + 1 + M] = y

        # Compact the interior pixels into a lane-dense (C_final, H*W) block and emit
        # it once (image row h sits at padded-flat [(h+1)*Wp + 1, (h+1)*Wp + 1 + W)).
        for h in range(H):
            src = (h + 1) * Wp + 1
            out_sc[:, h * W:(h + 1) * W] = feat[:, src:src + W]
        o_ref[0] = out_sc[0:C_final, :].astype(o_ref.dtype)

    return kernel


def dense_block_forward(x_nchw, w_packed, b_packed):
    """Fused DenseBlock forward.

    x_nchw:   (N, C0, H, W)
    w_packed: (L, g, 9*C_pad)  tap-major (ky,kx) x channel weights, zero-padded per layer
    b_packed: (L, g, 1)
    returns   (N, C0 + L*g, H, W)
    """
    N, C0, H, W = x_nchw.shape
    L, g, K9 = w_packed.shape
    C_pad = K9 // 9
    C_final = C0 + L * g
    Hp, Wp = H + 2, W + 2
    S = Hp * Wp

    # Zero-pad spatially once; flatten the padded image row-major (layout stays NCHW).
    xpad = jnp.pad(x_nchw, ((0, 0), (0, 0), (1, 1), (1, 1))).reshape(N, C0, S)

    out = pl.pallas_call(
        _make_dense_block_kernel(C0, C_pad, C_final, g, L, H, W),
        out_shape=jax.ShapeDtypeStruct((N, C_final, H * W), x_nchw.dtype),
        grid_spec=pltpu.PrefetchScalarGridSpec(
            num_scalar_prefetch=0,
            grid=(N,),
            in_specs=[
                pl.BlockSpec((1, C0, S), lambda n: (n, 0, 0)),            # padded image
                pl.BlockSpec((L, g, 9 * C_pad), lambda n: (0, 0, 0)),      # all weights
                pl.BlockSpec((L, g, 1), lambda n: (0, 0, 0)),              # all biases
            ],
            out_specs=pl.BlockSpec((1, C_final, H * W), lambda n: (n, 0, 0)),
            scratch_shapes=[
                pltpu.VMEM((C_pad, S), jnp.float32),        # feature slab
                pltpu.VMEM((C_pad, H * W), jnp.float32),    # compacted interior output
            ]),
        compiler_params=pltpu.CompilerParams(
            dimension_semantics=("parallel",)),
    )(xpad, w_packed, b_packed)

    # Free: contiguous split of the last dim, no transpose, no de-pad pass.
    return out.reshape(N, C_final, H, W)


class DenseBlockPallas:
    """Mirror of the PyTorch DenseBlock: num_layers of [conv3x3(pad=1) + ReLU], each
    consuming the channel-concat of all previous features; output is the full concat."""

    def __init__(self, in_channels, growth_rate, num_layers, key):
        self.params = []                       # (w_oihw, b), same layout as nn.Conv2d
        for i in range(num_layers):
            cin = in_channels + i * growth_rate
            key, kw, kb = jax.random.split(key, 3)
            bound = 1.0 / np.sqrt(cin * 9)
            w = jax.random.uniform(kw, (growth_rate, cin, 3, 3), jnp.float32, -bound, bound)
            b = jax.random.uniform(kb, (growth_rate,), jnp.float32, -bound, bound)
            self.params.append((w, b))

        C_final = in_channels + num_layers * growth_rate
        C_pad = ((C_final + 7) // 8) * 8       # sublane-aligned slab channel count
        ws, bs = [], []
        for (w, b) in self.params:
            cin = w.shape[1]
            # OIHW -> (g, tap, cin), zero-pad cin -> C_pad, flatten to (g, 9*C_pad).
            wt = jnp.transpose(w, (0, 2, 3, 1)).reshape(growth_rate, 9, cin)
            wt = jnp.pad(wt, ((0, 0), (0, 0), (0, C_pad - cin)))
            ws.append(wt.reshape(growth_rate, 9 * C_pad))
            bs.append(b.reshape(growth_rate, 1))
        self.w_packed = jnp.stack(ws, axis=0)   # (L, g, 9*C_pad)
        self.b_packed = jnp.stack(bs, axis=0)   # (L, g, 1)
        self._fwd = jax.jit(dense_block_forward)

    def __call__(self, x_nchw):
        return self._fwd(x_nchw, self.w_packed, self.b_packed)


# ---------- pure-JAX reference (for correctness checking only) ----------
def _dense_block_ref(params, x_nchw):
    x = jnp.transpose(x_nchw, (0, 2, 3, 1))
    feats = [x]
    for (w_oihw, b) in params:
        w_hwio = jnp.transpose(w_oihw, (2, 3, 1, 0))
        inp = jnp.concatenate(feats, axis=-1)
        y = jax.lax.conv_general_dilated(
            inp, w_hwio, window_strides=(1, 1), padding="SAME",
            dimension_numbers=("NHWC", "HWIO", "NHWC"))
        feats.append(jnp.maximum(y + b, 0.0))
    out = jnp.concatenate(feats, axis=-1)
    return jnp.transpose(out, (0, 3, 1, 2))


if __name__ == "__main__":
    key = jax.random.PRNGKey(0)
    kx, kp = jax.random.split(key)

    N, C, H, W = 2, 4, 16, 16              # NCHW, as in the PyTorch module
    growth_rate, num_layers = 4, 3

    x = jax.random.normal(kx, (N, C, H, W), jnp.float32)

    block = DenseBlockPallas(C, growth_rate, num_layers, kp)
    out = jax.block_until_ready(block(x))

    expected_channels = C + num_layers * growth_rate
    assert out.shape == (N, expected_channels, H, W), out.shape

    ref = jax.block_until_ready(_dense_block_ref(block.params, x))
    np.testing.assert_allclose(np.asarray(out), np.asarray(ref), rtol=1e-3, atol=1e-3)

    print("KERNEL_OK")
</pallas_src>

<mosaic_0001>
module attributes {stable_mosaic.version = 11 : i64} {
  func.func @kernel(%arg0: i32, %arg1: memref<1x4x324xf32, #tpu.memory_space<vmem>>, %arg2: memref<3x4x144xf32, #tpu.memory_space<vmem>>, %arg3: memref<3x4x1xf32, #tpu.memory_space<vmem>>, %arg4: memref<1x16x256xf32, #tpu.memory_space<vmem>>, %arg5: memref<16x324xf32, #tpu.memory_space<vmem>>, %arg6: memref<16x256xf32, #tpu.memory_space<vmem>>) attributes {dimension_semantics = [#tpu.dimension_semantics<parallel>], iteration_bounds = array<i64: 2>, scalar_prefetch = 0 : i64, scratch_operands = 2 : i64, tpu.core_type = #tpu.core_type<tc>, window_params = [{transform_indices = @transform_0, window_bounds = array<i64: 1, 4, 324>}, {pipeline_mode = #tpu.pipeline_mode<synchronous>, transform_indices = @transform_1, window_bounds = array<i64: 3, 4, 144>}, {pipeline_mode = #tpu.pipeline_mode<synchronous>, transform_indices = @transform_2, window_bounds = array<i64: 3, 4, 1>}, {transform_indices = @transform_3, window_bounds = array<i64: 1, 16, 256>}]} {
    %cst = arith.constant 0.000000e+00 : f32
    %0 = vector.broadcast %cst : f32 to vector<16x324xf32>
    %c0 = arith.constant 0 : index
    %c0_0 = arith.constant 0 : index
    %1 = vector.load %arg5[%c0, %c0_0] : memref<16x324xf32, #tpu.memory_space<vmem>>, vector<16x324xf32>
    tpu.vector_store %arg5[%c0, %c0_0], %0 {strides = array<i32>} : memref<16x324xf32, #tpu.memory_space<vmem>>, vector<16x324xf32>,
    %c0_1 = arith.constant 0 : index
    %c0_2 = arith.constant 0 : index
    %c0_3 = arith.constant 0 : index
    %2 = vector.load %arg1[%c0_1, %c0_2, %c0_3] : memref<1x4x324xf32, #tpu.memory_space<vmem>>, vector<1x4x324xf32>
    %3 = vector.shape_cast %2 : vector<1x4x324xf32> to vector<4x324xf32>
    %c0_4 = arith.constant 0 : index
    %c0_5 = arith.constant 0 : index
    %4 = vector.load %arg5[%c0_4, %c0_5] : memref<16x324xf32, #tpu.memory_space<vmem>>, vector<4x324xf32>
    tpu.vector_store %arg5[%c0_4, %c0_5], %3 {strides = array<i32>} : memref<16x324xf32, #tpu.memory_space<vmem>>, vector<4x324xf32>,
    %5 = tpu.iota {dimensions = array<i32: 1>} : vector<1x286xi32>
    %c16_i32 = arith.constant 16 : i32
    %6 = vector.broadcast %c16_i32 : i32 to vector<1x286xi32>
    %7 = arith.cmpi slt, %5, %6 : vector<1x286xi32>
    %c18_i32 = arith.constant 18 : i32
    %8 = vector.broadcast %c18_i32 : i32 to vector<1x286xi32>
    %9 = arith.cmpi sge, %5, %8 : vector<1x286xi32>
    %c34_i32 = arith.constant 34 : i32
    %10 = vector.broadcast %c34_i32 : i32 to vector<1x286xi32>
    %11 = arith.cmpi slt, %5, %10 : vector<1x286xi32>
    %12 = arith.andi %9, %11 : vector<1x286xi1>
    %13 = arith.ori %7, %12 : vector<1x286xi1>
    %c36_i32 = arith.constant 36 : i32
    %14 = vector.broadcast %c36_i32 : i32 to vector<1x286xi32>
    %15 = arith.cmpi sge, %5, %14 : vector<1x286xi32>
    %c52_i32 = arith.constant 52 : i32
    %16 = vector.broadcast %c52_i32 : i32 to vector<1x286xi32>
    %17 = arith.cmpi slt, %5, %16 : vector<1x286xi32>
    %18 = arith.andi %15, %17 : vector<1x286xi1>
    %19 = arith.ori %13, %18 : vector<1x286xi1>
    %c54_i32 = arith.constant 54 : i32
    %20 = vector.broadcast %c54_i32 : i32 to vector<1x286xi32>
    %21 = arith.cmpi sge, %5, %20 : vector<1x286xi32>
    %c70_i32 = arith.constant 70 : i32
    %22 = vector.broadcast %c70_i32 : i32 to vector<1x286xi32>
    %23 = arith.cmpi slt, %5, %22 : vector<1x286xi32>
    %24 = arith.andi %21, %23 : vector<1x286xi1>
    %25 = arith.ori %19, %24 : vector<1x286xi1>
    %c72_i32 = arith.constant 72 : i32
    %26 = vector.broadcast %c72_i32 : i32 to vector<1x286xi32>
    %27 = arith.cmpi sge, %5, %26 : vector<1x286xi32>
    %c88_i32 = arith.constant 88 : i32
    %28 = vector.broadcast %c88_i32 : i32 to vector<1x286xi32>
    %29 = arith.cmpi slt, %5, %28 : vector<1x286xi32>
    %30 = arith.andi %27, %29 : vector<1x286xi1>
    %31 = arith.ori %25, %30 : vector<1x286xi1>
    %c90_i32 = arith.constant 90 : i32
    %32 = vector.broadcast %c90_i32 : i32 to vector<1x286xi32>
    %33 = arith.cmpi sge, %5, %32 : vector<1x286xi32>
    %c106_i32 = arith.constant 106 : i32
    %34 = vector.broadcast %c106_i32 : i32 to vector<1x286xi32>
    %35 = arith.cmpi slt, %5, %34 : vector<1x286xi32>
    %36 = arith.andi %33, %35 : vector<1x286xi1>
    %37 = arith.ori %31, %36 : vector<1x286xi1>
    %c108_i32 = arith.constant 108 : i32
    %38 = vector.broadcast %c108_i32 : i32 to vector<1x286xi32>
    %39 = arith.cmpi sge, %5, %38 : vector<1x286xi32>
    %c124_i32 = arith.constant 124 : i32
    %40 = vector.broadcast %c124_i32 : i32 to vector<1x286xi32>
    %41 = arith.cmpi slt, %5, %40 : vector<1x286xi32>
    %42 = arith.andi %39, %41 : vector<1x286xi1>
    %43 = arith.ori %37, %42 : vector<1x286xi1>
    %c126_i32 = arith.constant 126 : i32
    %44 = vector.broadcast %c126_i32 : i32 to vector<1x286xi32>
    %45 = arith.cmpi sge, %5, %44 : vector<1x286xi32>
    %c142_i32 = arith.constant 142 : i32
    %46 = vector.broadcast %c142_i32 : i32 to vector<1x286xi32>
    %47 = arith.cmpi slt, %5, %46 : vector<1x286xi32>
    %48 = arith.andi %45, %47 : vector<1x286xi1>
    %49 = arith.ori %43, %48 : vector<1x286xi1>
    %c144_i32 = arith.constant 144 : i32
    %50 = vector.broadcast %c144_i32 : i32 to vector<1x286xi32>
    %51 = arith.cmpi sge, %5, %50 : vector<1x286xi32>
    %c160_i32 = arith.constant 160 : i32
    %52 = vector.broadcast %c160_i32 : i32 to vector<1x286xi32>
    %53 = arith.cmpi slt, %5, %52 : vector<1x286xi32>
    %54 = arith.andi %51, %53 : vector<1x286xi1>
    %55 = arith.ori %49, %54 : vector<1x286xi1>
    %c162_i32 = arith.constant 162 : i32
    %56 = vector.broadcast %c162_i32 : i32 to vector<1x286xi32>
    %57 = arith.cmpi sge, %5, %56 : vector<1x286xi32>
    %c178_i32 = arith.constant 178 : i32
    %58 = vector.broadcast %c178_i32 : i32 to vector<1x286xi32>
    %59 = arith.cmpi slt, %5, %58 : vector<1x286xi32>
    %60 = arith.andi %57, %59 : vector<1x286xi1>
    %61 = arith.ori %55, %60 : vector<1x286xi1>
    %c180_i32 = arith.constant 180 : i32
    %62 = vector.broadcast %c180_i32 : i32 to vector<1x286xi32>
    %63 = arith.cmpi sge, %5, %62 : vector<1x286xi32>
    %c196_i32 = arith.constant 196 : i32
    %64 = vector.broadcast %c196_i32 : i32 to vector<1x286xi32>
    %65 = arith.cmpi slt, %5, %64 : vector<1x286xi32>
    %66 = arith.andi %63, %65 : vector<1x286xi1>
    %67 = arith.ori %61, %66 : vector<1x286xi1>
    %c198_i32 = arith.constant 198 : i32
    %68 = vector.broadcast %c198_i32 : i32 to vector<1x286xi32>
    %69 = arith.cmpi sge, %5, %68 : vector<1x286xi32>
    %c214_i32 = arith.constant 214 : i32
    %70 = vector.broadcast %c214_i32 : i32 to vector<1x286xi32>
    %71 = arith.cmpi slt, %5, %70 : vector<1x286xi32>
    %72 = arith.andi %69, %71 : vector<1x286xi1>
    %73 = arith.ori %67, %72 : vector<1x286xi1>
    %c216_i32 = arith.constant 216 : i32
    %74 = vector.broadcast %c216_i32 : i32 to vector<1x286xi32>
    %75 = arith.cmpi sge, %5, %74 : vector<1x286xi32>
    %c232_i32 = arith.constant 232 : i32
    %76 = vector.broadcast %c232_i32 : i32 to vector<1x286xi32>
    %77 = arith.cmpi slt, %5, %76 : vector<1x286xi32>
    %78 = arith.andi %75, %77 : vector<1x286xi1>
    %79 = arith.ori %73, %78 : vector<1x286xi1>
    %c234_i32 = arith.constant 234 : i32
    %80 = vector.broadcast %c234_i32 : i32 to vector<1x286xi32>
    %81 = arith.cmpi sge, %5, %80 : vector<1x286xi32>
    %c250_i32 = arith.constant 250 : i32
    %82 = vector.broadcast %c250_i32 : i32 to vector<1x286xi32>
    %83 = arith.cmpi slt, %5, %82 : vector<1x286xi32>
    %84 = arith.andi %81, %83 : vector<1x286xi1>
    %85 = arith.ori %79, %84 : vector<1x286xi1>
    %c252_i32 = arith.constant 252 : i32
    %86 = vector.broadcast %c252_i32 : i32 to vector<1x286xi32>
    %87 = arith.cmpi sge, %5, %86 : vector<1x286xi32>
    %c268_i32 = arith.constant 268 : i32
    %88 = vector.broadcast %c268_i32 : i32 to vector<1x286xi32>
    %89 = arith.cmpi slt, %5, %88 : vector<1x286xi32>
    %90 = arith.andi %87, %89 : vector<1x286xi1>
    %91 = arith.ori %85, %90 : vector<1x286xi1>
    %c270_i32 = arith.constant 270 : i32
    %92 = vector.broadcast %c270_i32 : i32 to vector<1x286xi32>
    %93 = arith.cmpi sge, %5, %92 : vector<1x286xi32>
    %c286_i32 = arith.constant 286 : i32
    %94 = vector.broadcast %c286_i32 : i32 to vector<1x286xi32>
    %95 = arith.cmpi slt, %5, %94 : vector<1x286xi32>
    %96 = arith.andi %93, %95 : vector<1x286xi1>
    %97 = arith.ori %91, %96 : vector<1x286xi1>
    %98 = arith.extui %97 : vector<1x286xi1> to vector<1x286xi32>
    %99 = arith.sitofp %98 : vector<1x286xi32> to vector<1x286xf32>
    %c0_6 = arith.constant 0 : index
    %c0_7 = arith.constant 0 : index
    %100 = vector.load %arg5[%c0_6, %c0_7] : memref<16x324xf32, #tpu.memory_space<vmem>>, vector<16x286xf32>
    %c0_8 = arith.constant 0 : index
    %c1 = arith.constant 1 : index
    %101 = vector.load %arg5[%c0_8, %c1] : memref<16x324xf32, #tpu.memory_space<vmem>>, vector<16x286xf32>
    %c0_9 = arith.constant 0 : index
    %c2 = arith.constant 2 : index
    %102 = vector.load %arg5[%c0_9, %c2] : memref<16x324xf32, #tpu.memory_space<vmem>>, vector<16x286xf32>
    %c0_10 = arith.constant 0 : index
    %c18 = arith.constant 18 : index
    %103 = vector.load %arg5[%c0_10, %c18] : memref<16x324xf32, #tpu.memory_space<vmem>>, vector<16x286xf32>
    %c0_11 = arith.constant 0 : index
    %c19 = arith.constant 19 : index
    %104 = vector.load %arg5[%c0_11, %c19] : memref<16x324xf32, #tpu.memory_space<vmem>>, vector<16x286xf32>
    %c0_12 = arith.constant 0 : index
    %c20 = arith.constant 20 : index
    %105 = vector.load %arg5[%c0_12, %c20] : memref<16x324xf32, #tpu.memory_space<vmem>>, vector<16x286xf32>
    %c0_13 = arith.constant 0 : index
    %c36 = arith.constant 36 : index
    %106 = vector.load %arg5[%c0_13, %c36] : memref<16x324xf32, #tpu.memory_space<vmem>>, vector<16x286xf32>
    %c0_14 = arith.constant 0 : index
    %c37 = arith.constant 37 : index
    %107 = vector.load %arg5[%c0_14, %c37] : memref<16x324xf32, #tpu.memory_space<vmem>>, vector<16x286xf32>
    %c0_15 = arith.constant 0 : index
    %c38 = arith.constant 38 : index
    %108 = vector.load %arg5[%c0_15, %c38] : memref<16x324xf32, #tpu.memory_space<vmem>>, vector<16x286xf32>
    %109 = tpu.concatenate %100, %101, %102, %103, %104, %105, %106, %107, %108 in 0 : vector<16x286xf32>, vector<16x286xf32>, vector<16x286xf32>, vector<16x286xf32>, vector<16x286xf32>, vector<16x286xf32>, vector<16x286xf32>, vector<16x286xf32>, vector<16x286xf32> -> vector<144x286xf32>
    %c0_16 = arith.constant 0 : index
    %c0_17 = arith.constant 0 : index
    %c0_18 = arith.constant 0 : index
    %110 = vector.load %arg2[%c0_16, %c0_17, %c0_18] : memref<3x4x144xf32, #tpu.memory_space<vmem>>, vector<1x4x144xf32>
    %111 = vector.shape_cast %110 : vector<1x4x144xf32> to vector<4x144xf32>
    %cst_19 = arith.constant dense<0.000000e+00> : vector<4x286xf32>
    %112 = tpu.matmul %111, %109, %cst_19 {dimension_numbers = #tpu.dot_dimension_numbers<[1], [0], [0], [1], [0, 0, 1, 1], [], []>} : vector<4x144xf32>, vector<144x286xf32>, vector<4x286xf32> -> vector<4x286xf32>
    %c0_20 = arith.constant 0 : index
    %c0_21 = arith.constant 0 : index
    %c0_22 = arith.constant 0 : index
    %113 = vector.load %arg3[%c0_20, %c0_21, %c0_22] : memref<3x4x1xf32, #tpu.memory_space<vmem>>, vector<1x4x1xf32>
    %114 = vector.shape_cast %113 : vector<1x4x1xf32> to vector<4x1xf32>
    %115 = vector.broadcast %114 : vector<4x1xf32> to vector<4x286xf32>
    %116 = arith.addf %112, %115 : vector<4x286xf32>
    %cst_23 = arith.constant 0.000000e+00 : f32
    %117 = vector.broadcast %cst_23 : f32 to vector<4x286xf32>
    %118 = arith.maximumf %116, %117 : vector<4x286xf32>
    %119 = vector.broadcast %99 : vector<1x286xf32> to vector<4x286xf32>
    %120 = arith.mulf %118, %119 : vector<4x286xf32>
    %c4 = arith.constant 4 : index
    %c19_24 = arith.constant 19 : index
    %121 = vector.load %arg5[%c4, %c19_24] : memref<16x324xf32, #tpu.memory_space<vmem>>, vector<4x286xf32>
    tpu.vector_store %arg5[%c4, %c19_24], %120 {strides = array<i32>} : memref<16x324xf32, #tpu.memory_space<vmem>>, vector<4x286xf32>,
    %c0_25 = arith.constant 0 : index
    %c0_26 = arith.constant 0 : index
    %122 = vector.load %arg5[%c0_25, %c0_26] : memref<16x324xf32, #tpu.memory_space<vmem>>, vector<16x286xf32>
    %c0_27 = arith.constant 0 : index
    %c1_28 = arith.constant 1 : index
    %123 = vector.load %arg5[%c0_27, %c1_28] : memref<16x324xf32, #tpu.memory_space<vmem>>, vector<16x286xf32>
    %c0_29 = arith.constant 0 : index
    %c2_30 = arith.constant 2 : index
    %124 = vector.load %arg5[%c0_29, %c2_30] : memref<16x324xf32, #tpu.memory_space<vmem>>, vector<16x286xf32>
    %c0_31 = arith.constant 0 : index
    %c18_32 = arith.constant 18 : index
    %125 = vector.load %arg5[%c0_31, %c18_32] : memref<16x324xf32, #tpu.memory_space<vmem>>, vector<16x286xf32>
    %c0_33 = arith.constant 0 : index
    %c19_34 = arith.constant 19 : index
    %126 = vector.load %arg5[%c0_33, %c19_34] : memref<16x324xf32, #tpu.memory_space<vmem>>, vector<16x286xf32>
    %c0_35 = arith.constant 0 : index
    %c20_36 = arith.constant 20 : index
    %127 = vector.load %arg5[%c0_35, %c20_36] : memref<16x324xf32, #tpu.memory_space<vmem>>, vector<16x286xf32>
    %c0_37 = arith.constant 0 : index
    %c36_38 = arith.constant 36 : index
    %128 = vector.load %arg5[%c0_37, %c36_38] : memref<16x324xf32, #tpu.memory_space<vmem>>, vector<16x286xf32>
    %c0_39 = arith.constant 0 : index
    %c37_40 = arith.constant 37 : index
    %129 = vector.load %arg5[%c0_39, %c37_40] : memref<16x324xf32, #tpu.memory_space<vmem>>, vector<16x286xf32>
    %c0_41 = arith.constant 0 : index
    %c38_42 = arith.constant 38 : index
    %130 = vector.load %arg5[%c0_41, %c38_42] : memref<16x324xf32, #tpu.memory_space<vmem>>, vector<16x286xf32>
    %131 = tpu.concatenate %122, %123, %124, %125, %126, %127, %128, %129, %130 in 0 : vector<16x286xf32>, vector<16x286xf32>, vector<16x286xf32>, vector<16x286xf32>, vector<16x286xf32>, vector<16x286xf32>, vector<16x286xf32>, vector<16x286xf32>, vector<16x286xf32> -> vector<144x286xf32>
    %c1_43 = arith.constant 1 : index
    %c0_44 = arith.constant 0 : index
    %c0_45 = arith.constant 0 : index
    %132 = vector.load %arg2[%c1_43, %c0_44, %c0_45] : memref<3x4x144xf32, #tpu.memory_space<vmem>>, vector<1x4x144xf32>
    %133 = vector.shape_cast %132 : vector<1x4x144xf32> to vector<4x144xf32>
    %cst_46 = arith.constant dense<0.000000e+00> : vector<4x286xf32>
    %134 = tpu.matmul %133, %131, %cst_46 {dimension_numbers = #tpu.dot_dimension_numbers<[1], [0], [0], [1], [0, 0, 1, 1], [], []>} : vector<4x144xf32>, vector<144x286xf32>, vector<4x286xf32> -> vector<4x286xf32>
    %c1_47 = arith.constant 1 : index
    %c0_48 = arith.constant 0 : index
    %c0_49 = arith.constant 0 : index
    %135 = vector.load %arg3[%c1_47, %c0_48, %c0_49] : memref<3x4x1xf32, #tpu.memory_space<vmem>>, vector<1x4x1xf32>
    %136 = vector.shape_cast %135 : vector<1x4x1xf32> to vector<4x1xf32>
    %137 = vector.broadcast %136 : vector<4x1xf32> to vector<4x286xf32>
    %138 = arith.addf %134, %137 : vector<4x286xf32>
    %cst_50 = arith.constant 0.000000e+00 : f32
    %139 = vector.broadcast %cst_50 : f32 to vector<4x286xf32>
    %140 = arith.maximumf %138, %139 : vector<4x286xf32>
    %141 = vector.broadcast %99 : vector<1x286xf32> to vector<4x286xf32>
    %142 = arith.mulf %140, %141 : vector<4x286xf32>
    %c8 = arith.constant 8 : index
    %c19_51 = arith.constant 19 : index
    %143 = vector.load %arg5[%c8, %c19_51] : memref<16x324xf32, #tpu.memory_space<vmem>>, vector<4x286xf32>
    tpu.vector_store %arg5[%c8, %c19_51], %142 {strides = array<i32>} : memref<16x324xf32, #tpu.memory_space<vmem>>, vector<4x286xf32>,
    %c0_52 = arith.constant 0 : index
    %c0_53 = arith.constant 0 : index
    %144 = vector.load %arg5[%c0_52, %c0_53] : memref<16x324xf32, #tpu.memory_space<vmem>>, vector<16x286xf32>
    %c0_54 = arith.constant 0 : index
    %c1_55 = arith.constant 1 : index
    %145 = vector.load %arg5[%c0_54, %c1_55] : memref<16x324xf32, #tpu.memory_space<vmem>>, vector<16x286xf32>
    %c0_56 = arith.constant 0 : index
    %c2_57 = arith.constant 2 : index
    %146 = vector.load %arg5[%c0_56, %c2_57] : memref<16x324xf32, #tpu.memory_space<vmem>>, vector<16x286xf32>
    %c0_58 = arith.constant 0 : index
    %c18_59 = arith.constant 18 : index
    %147 = vector.load %arg5[%c0_58, %c18_59] : memref<16x324xf32, #tpu.memory_space<vmem>>, vector<16x286xf32>
    %c0_60 = arith.constant 0 : index
    %c19_61 = arith.constant 19 : index
    %148 = vector.load %arg5[%c0_60, %c19_61] : memref<16x324xf32, #tpu.memory_space<vmem>>, vector<16x286xf32>
    %c0_62 = arith.constant 0 : index
    %c20_63 = arith.constant 20 : index
    %149 = vector.load %arg5[%c0_62, %c20_63] : memref<16x324xf32, #tpu.memory_space<vmem>>, vector<16x286xf32>
    %c0_64 = arith.constant 0 : index
    %c36_65 = arith.constant 36 : index
    %150 = vector.load %arg5[%c0_64, %c36_65] : memref<16x324xf32, #tpu.memory_space<vmem>>, vector<16x286xf32>
    %c0_66 = arith.constant 0 : index
    %c37_67 = arith.constant 37 : index
    %151 = vector.load %arg5[%c0_66, %c37_67] : memref<16x324xf32, #tpu.memory_space<vmem>>, vector<16x286xf32>
    %c0_68 = arith.constant 0 : index
    %c38_69 = arith.constant 38 : index
    %152 = vector.load %arg5[%c0_68, %c38_69] : memref<16x324xf32, #tpu.memory_space<vmem>>, vector<16x286xf32>
    %153 = tpu.concatenate %144, %145, %146, %147, %148, %149, %150, %151, %152 in 0 : vector<16x286xf32>, vector<16x286xf32>, vector<16x286xf32>, vector<16x286xf32>, vector<16x286xf32>, vector<16x286xf32>, vector<16x286xf32>, vector<16x286xf32>, vector<16x286xf32> -> vector<144x286xf32>
    %c2_70 = arith.constant 2 : index
    %c0_71 = arith.constant 0 : index
    %c0_72 = arith.constant 0 : index
    %154 = vector.load %arg2[%c2_70, %c0_71, %c0_72] : memref<3x4x144xf32, #tpu.memory_space<vmem>>, vector<1x4x144xf32>
    %155 = vector.shape_cast %154 : vector<1x4x144xf32> to vector<4x144xf32>
    %cst_73 = arith.constant dense<0.000000e+00> : vector<4x286xf32>
    %156 = tpu.matmul %155, %153, %cst_73 {dimension_numbers = #tpu.dot_dimension_numbers<[1], [0], [0], [1], [0, 0, 1, 1], [], []>} : vector<4x144xf32>, vector<144x286xf32>, vector<4x286xf32> -> vector<4x286xf32>
    %c2_74 = arith.constant 2 : index
    %c0_75 = arith.constant 0 : index
    %c0_76 = arith.constant 0 : index
    %157 = vector.load %arg3[%c2_74, %c0_75, %c0_76] : memref<3x4x1xf32, #tpu.memory_space<vmem>>, vector<1x4x1xf32>
    %158 = vector.shape_cast %157 : vector<1x4x1xf32> to vector<4x1xf32>
    %159 = vector.broadcast %158 : vector<4x1xf32> to vector<4x286xf32>
    %160 = arith.addf %156, %159 : vector<4x286xf32>
    %cst_77 = arith.constant 0.000000e+00 : f32
    %161 = vector.broadcast %cst_77 : f32 to vector<4x286xf32>
    %162 = arith.maximumf %160, %161 : vector<4x286xf32>
    %163 = vector.broadcast %99 : vector<1x286xf32> to vector<4x286xf32>
    %164 = arith.mulf %162, %163 : vector<4x286xf32>
    %c12 = arith.constant 12 : index
    %c19_78 = arith.constant 19 : index
    %165 = vector.load %arg5[%c12, %c19_78] : memref<16x324xf32, #tpu.memory_space<vmem>>, vector<4x286xf32>
    tpu.vector_store %arg5[%c12, %c19_78], %164 {strides = array<i32>} : memref<16x324xf32, #tpu.memory_space<vmem>>, vector<4x286xf32>,
    %c0_79 = arith.constant 0 : index
    %c19_80 = arith.constant 19 : index
    %166 = vector.load %arg5[%c0_79, %c19_80] : memref<16x324xf32, #tpu.memory_space<vmem>>, vector<16x16xf32>
    %c0_81 = arith.constant 0 : index
    %c0_82 = arith.constant 0 : index
    %167 = vector.load %arg6[%c0_81, %c0_82] : memref<16x256xf32, #tpu.memory_space<vmem>>, vector<16x16xf32>
    tpu.vector_store %arg6[%c0_81, %c0_82], %166 {strides = array<i32>} : memref<16x256xf32, #tpu.memory_space<vmem>>, vector<16x16xf32>,
    %c0_83 = arith.constant 0 : index
    %c37_84 = arith.constant 37 : index
    %168 = vector.load %arg5[%c0_83, %c37_84] : memref<16x324xf32, #tpu.memory_space<vmem>>, vector<16x16xf32>
    %c0_85 = arith.constant 0 : index
    %c16 = arith.constant 16 : index
    %169 = vector.load %arg6[%c0_85, %c16] : memref<16x256xf32, #tpu.memory_space<vmem>>, vector<16x16xf32>
    tpu.vector_store %arg6[%c0_85, %c16], %168 {strides = array<i32>} : memref<16x256xf32, #tpu.memory_space<vmem>>, vector<16x16xf32>,
    %c0_86 = arith.constant 0 : index
    %c55 = arith.constant 55 : index
    %170 = vector.load %arg5[%c0_86, %c55] : memref<16x324xf32, #tpu.memory_space<vmem>>, vector<16x16xf32>
    %c0_87 = arith.constant 0 : index
    %c32 = arith.constant 32 : index
    %171 = vector.load %arg6[%c0_87, %c32] : memref<16x256xf32, #tpu.memory_space<vmem>>, vector<16x16xf32>
    tpu.vector_store %arg6[%c0_87, %c32], %170 {strides = array<i32>} : memref<16x256xf32, #tpu.memory_space<vmem>>, vector<16x16xf32>,
    %c0_88 = arith.constant 0 : index
    %c73 = arith.constant 73 : index
    %172 = vector.load %arg5[%c0_88, %c73] : memref<16x324xf32, #tpu.memory_space<vmem>>, vector<16x16xf32>
    %c0_89 = arith.constant 0 : index
    %c48 = arith.constant 48 : index
    %173 = vector.load %arg6[%c0_89, %c48] : memref<16x256xf32, #tpu.memory_space<vmem>>, vector<16x16xf32>
    tpu.vector_store %arg6[%c0_89, %c48], %172 {strides = array<i32>} : memref<16x256xf32, #tpu.memory_space<vmem>>, vector<16x16xf32>,
    %c0_90 = arith.constant 0 : index
    %c91 = arith.constant 91 : index
    %174 = vector.load %arg5[%c0_90, %c91] : memref<16x324xf32, #tpu.memory_space<vmem>>, vector<16x16xf32>
    %c0_91 = arith.constant 0 : index
    %c64 = arith.constant 64 : index
    %175 = vector.load %arg6[%c0_91, %c64] : memref<16x256xf32, #tpu.memory_space<vmem>>, vector<16x16xf32>
    tpu.vector_store %arg6[%c0_91, %c64], %174 {strides = array<i32>} : memref<16x256xf32, #tpu.memory_space<vmem>>, vector<16x16xf32>,
    %c0_92 = arith.constant 0 : index
    %c109 = arith.constant 109 : index
    %176 = vector.load %arg5[%c0_92, %c109] : memref<16x324xf32, #tpu.memory_space<vmem>>, vector<16x16xf32>
    %c0_93 = arith.constant 0 : index
    %c80 = arith.constant 80 : index
    %177 = vector.load %arg6[%c0_93, %c80] : memref<16x256xf32, #tpu.memory_space<vmem>>, vector<16x16xf32>
    tpu.vector_store %arg6[%c0_93, %c80], %176 {strides = array<i32>} : memref<16x256xf32, #tpu.memory_space<vmem>>, vector<16x16xf32>,
    %c0_94 = arith.constant 0 : index
    %c127 = arith.constant 127 : index
    %178 = vector.load %arg5[%c0_94, %c127] : memref<16x324xf32, #tpu.memory_space<vmem>>, vector<16x16xf32>
    %c0_95 = arith.constant 0 : index
    %c96 = arith.constant 96 : index
    %179 = vector.load %arg6[%c0_95, %c96] : memref<16x256xf32, #tpu.memory_space<vmem>>, vector<16x16xf32>
    tpu.vector_store %arg6[%c0_95, %c96], %178 {strides = array<i32>} : memref<16x256xf32, #tpu.memory_space<vmem>>, vector<16x16xf32>,
    %c0_96 = arith.constant 0 : index
    %c145 = arith.constant 145 : index
    %180 = vector.load %arg5[%c0_96, %c145] : memref<16x324xf32, #tpu.memory_space<vmem>>, vector<16x16xf32>
    %c0_97 = arith.constant 0 : index
    %c112 = arith.constant 112 : index
    %181 = vector.load %arg6[%c0_97, %c112] : memref<16x256xf32, #tpu.memory_space<vmem>>, vector<16x16xf32>
    tpu.vector_store %arg6[%c0_97, %c112], %180 {strides = array<i32>} : memref<16x256xf32, #tpu.memory_space<vmem>>, vector<16x16xf32>,
    %c0_98 = arith.constant 0 : index
    %c163 = arith.constant 163 : index
    %182 = vector.load %arg5[%c0_98, %c163] : memref<16x324xf32, #tpu.memory_space<vmem>>, vector<16x16xf32>
    %c0_99 = arith.constant 0 : index
    %c128 = arith.constant 128 : index
    %183 = vector.load %arg6[%c0_99, %c128] : memref<16x256xf32, #tpu.memory_space<vmem>>, vector<16x16xf32>
    tpu.vector_store %arg6[%c0_99, %c128], %182 {strides = array<i32>} : memref<16x256xf32, #tpu.memory_space<vmem>>, vector<16x16xf32>,
    %c0_100 = arith.constant 0 : index
    %c181 = arith.constant 181 : index
    %184 = vector.load %arg5[%c0_100, %c181] : memref<16x324xf32, #tpu.memory_space<vmem>>, vector<16x16xf32>
    %c0_101 = arith.constant 0 : index
    %c144 = arith.constant 144 : index
    %185 = vector.load %arg6[%c0_101, %c144] : memref<16x256xf32, #tpu.memory_space<vmem>>, vector<16x16xf32>
    tpu.vector_store %arg6[%c0_101, %c144], %184 {strides = array<i32>} : memref<16x256xf32, #tpu.memory_space<vmem>>, vector<16x16xf32>,
    %c0_102 = arith.constant 0 : index
    %c199 = arith.constant 199 : index
    %186 = vector.load %arg5[%c0_102, %c199] : memref<16x324xf32, #tpu.memory_space<vmem>>, vector<16x16xf32>
    %c0_103 = arith.constant 0 : index
    %c160 = arith.constant 160 : index
    %187 = vector.load %arg6[%c0_103, %c160] : memref<16x256xf32, #tpu.memory_space<vmem>>, vector<16x16xf32>
    tpu.vector_store %arg6[%c0_103, %c160], %186 {strides = array<i32>} : memref<16x256xf32, #tpu.memory_space<vmem>>, vector<16x16xf32>,
    %c0_104 = arith.constant 0 : index
    %c217 = arith.constant 217 : index
    %188 = vector.load %arg5[%c0_104, %c217] : memref<16x324xf32, #tpu.memory_space<vmem>>, vector<16x16xf32>
    %c0_105 = arith.constant 0 : index
    %c176 = arith.constant 176 : index
    %189 = vector.load %arg6[%c0_105, %c176] : memref<16x256xf32, #tpu.memory_space<vmem>>, vector<16x16xf32>
    tpu.vector_store %arg6[%c0_105, %c176], %188 {strides = array<i32>} : memref<16x256xf32, #tpu.memory_space<vmem>>, vector<16x16xf32>,
    %c0_106 = arith.constant 0 : index
    %c235 = arith.constant 235 : index
    %190 = vector.load %arg5[%c0_106, %c235] : memref<16x324xf32, #tpu.memory_space<vmem>>, vector<16x16xf32>
    %c0_107 = arith.constant 0 : index
    %c192 = arith.constant 192 : index
    %191 = vector.load %arg6[%c0_107, %c192] : memref<16x256xf32, #tpu.memory_space<vmem>>, vector<16x16xf32>
    tpu.vector_store %arg6[%c0_107, %c192], %190 {strides = array<i32>} : memref<16x256xf32, #tpu.memory_space<vmem>>, vector<16x16xf32>,
    %c0_108 = arith.constant 0 : index
    %c253 = arith.constant 253 : index
    %192 = vector.load %arg5[%c0_108, %c253] : memref<16x324xf32, #tpu.memory_space<vmem>>, vector<16x16xf32>
    %c0_109 = arith.constant 0 : index
    %c208 = arith.constant 208 : index
    %193 = vector.load %arg6[%c0_109, %c208] : memref<16x256xf32, #tpu.memory_space<vmem>>, vector<16x16xf32>
    tpu.vector_store %arg6[%c0_109, %c208], %192 {strides = array<i32>} : memref<16x256xf32, #tpu.memory_space<vmem>>, vector<16x16xf32>,
    %c0_110 = arith.constant 0 : index
    %c271 = arith.constant 271 : index
    %194 = vector.load %arg5[%c0_110, %c271] : memref<16x324xf32, #tpu.memory_space<vmem>>, vector<16x16xf32>
    %c0_111 = arith.constant 0 : index
    %c224 = arith.constant 224 : index
    %195 = vector.load %arg6[%c0_111, %c224] : memref<16x256xf32, #tpu.memory_space<vmem>>, vector<16x16xf32>
    tpu.vector_store %arg6[%c0_111, %c224], %194 {strides = array<i32>} : memref<16x256xf32, #tpu.memory_space<vmem>>, vector<16x16xf32>,
    %c0_112 = arith.constant 0 : index
    %c289 = arith.constant 289 : index
    %196 = vector.load %arg5[%c0_112, %c289] : memref<16x324xf32, #tpu.memory_space<vmem>>, vector<16x16xf32>
    %c0_113 = arith.constant 0 : index
    %c240 = arith.constant 240 : index
    %197 = vector.load %arg6[%c0_113, %c240] : memref<16x256xf32, #tpu.memory_space<vmem>>, vector<16x16xf32>
    tpu.vector_store %arg6[%c0_113, %c240], %196 {strides = array<i32>} : memref<16x256xf32, #tpu.memory_space<vmem>>, vector<16x16xf32>,
    %c0_114 = arith.constant 0 : index
    %c0_115 = arith.constant 0 : index
    %198 = vector.load %arg6[%c0_114, %c0_115] : memref<16x256xf32, #tpu.memory_space<vmem>>, vector<16x256xf32>
    %c0_116 = arith.constant 0 : index
    %c0_117 = arith.constant 0 : index
    %c0_118 = arith.constant 0 : index
    %199 = vector.load %arg4[%c0_116, %c0_117, %c0_118] : memref<1x16x256xf32, #tpu.memory_space<vmem>>, vector<1x16x256xf32>
    %200 = vector.shape_cast %199 : vector<1x16x256xf32> to vector<16x256xf32>
    %201 = vector.shape_cast %198 : vector<16x256xf32> to vector<1x16x256xf32>
    tpu.vector_store %arg4[%c0_116, %c0_117, %c0_118], %201 {strides = array<i32>} : memref<1x16x256xf32, #tpu.memory_space<vmem>>, vector<1x16x256xf32>,
    return
  }
  func.func @transform_0(%arg0: i32) -> (i32, i32, i32) {
    %c0_i32 = arith.constant 0 : i32
    %c0_i32_0 = arith.constant 0 : i32
    %c0_i32_1 = arith.constant 0 : i32
    return %arg0, %c0_i32, %c0_i32_0 : i32, i32, i32
  }
  func.func @transform_1(%arg0: i32) -> (i32, i32, i32) {
    %c0_i32 = arith.constant 0 : i32
    %c0_i32_0 = arith.constant 0 : i32
    %c0_i32_1 = arith.constant 0 : i32
    %c0_i32_2 = arith.constant 0 : i32
    return %c0_i32, %c0_i32_0, %c0_i32_1 : i32, i32, i32
  }
  func.func @transform_2(%arg0: i32) -> (i32, i32, i32) {
    %c0_i32 = arith.constant 0 : i32
    %c0_i32_0 = arith.constant 0 : i32
    %c0_i32_1 = arith.constant 0 : i32
    %c0_i32_2 = arith.constant 0 : i32
    return %c0_i32, %c0_i32_0, %c0_i32_1 : i32, i32, i32
  }
  func.func @transform_3(%arg0: i32) -> (i32, i32, i32) {
    %c0_i32 = arith.constant 0 : i32
    %c0_i32_0 = arith.constant 0 : i32
    %c0_i32_1 = arith.constant 0 : i32
    return %arg0, %c0_i32, %c0_i32_0 : i32, i32, i32
  }
}

</mosaic_0001>

<llo_original>
// kernel: dense_block_forward.1
$region0: #{dense_block_forward.1}
  #allocation0 [shape = 'u32[]', space=smem, size = 0x4, offset = 0x4, fixed_abs, tag = 'smem constant byte address 0x4 - core index']
  #allocation1 [shape = 'u32[144,128]{1,0:T(1,128)}', space=vmem, size = 0x12000, scoped, tag = 'internal scratch']
  #allocation2 [shape = 'f32[16,324]{1,0:T(8,128)}', space=vmem, size = 0x6000, scoped, tag = 'scratch operand']
  #allocation3 [shape = 'f32[16,256]{1,0:T(8,128)}', space=vmem, size = 0x4000, scoped, tag = 'scratch operand']
  %s0 = inlined_call_operand.vmem [shape: f32[2,4,324], index: 0, kind: input, shape index: {}]
  %s1 = inlined_call_operand.vmem [shape: f32[3,4,144], index: 1, kind: input, shape index: {}]
  %s2 = inlined_call_operand.vmem [shape: f32[3,4,1], index: 2, kind: input, shape index: {}]
  %s3 = inlined_call_operand.vmem [shape: f32[2,16,256], index: 3, kind: output, shape index: {}]
  %s4 = sld [smem:[#allocation0]]
  $region45: #{dense_block_forward.1} parent=0
    _
  %s6 = ssub.s32 1, %s4
  %s7 = scalar_select 0, %s6, %s4
  loop: start=0, step=1, limit=4
  $region2: #{dense_block_forward.1} parent=0 // loop_pre_header
    _
  $region3: #{dense_block_forward.1} parent=0 // loop_header
    %s9 = sphi 0, %s13
    %p10 = scmp.ge.s32.totalorder %s9, 4
    %s19 = sphi 0, %s21
    %s22 = sphi 0, %s19
    %s23 = sphi 0, %s22
    %s39 = sphi 0, %s23
    %s43 = sphi 0, %s43
    %s45 = sphi 0, %s43
    %s46 = sphi 0, %s45
    %s60 = sphi 0, %s46
    %s64 = sphi 0, %s64
    %s66 = sphi 0, %s64
    %s67 = sphi 0, %s66
    %s81 = sphi 0, %s67
    %s87 = sphi 0, %s89
    %s90 = sphi 0, %s87
    %s91 = sphi 0, %s90
    %s107 = sphi 0, %s91
  $region4: #{dense_block_forward.1} parent=0 // loop_header_branch
    %12 = sbr.rel (%p10) target = $region8
  $region5: #{dense_block_forward.1} parent=0 // loop_body
    %s14 = ssub.s32 %s9, 1
    %s15 = ssub.s32 %s9, 2
    %s16 = sadd.s32 %s9, 1
    %s17 = ssub.s32 %s9, %s16
    %p18 = scmp.eq.s32.totalorder %s17, 0
    %s20 = sadd.s32 %s19, 1
    %s21 = scalar_select %p18, %s19, %s20
    %p24 = pneg %p18
    %p25 = scmp.eq.s32.totalorder %s9, 1
    %p26 = por %p24, %p25
    %p27 = scmp.ne.s32.totalorder %s19, %s22
    %p28 = scmp.eq.s32.totalorder %s9, 0
    %p29 = por %p27, %p28
    %p30 = scmp.ne.s32.totalorder %s19, %s22
    %p31 = scmp.eq.s32.totalorder %s14, 1
    %p32 = por %p30, %p31
    %p33 = scmp.ne.s32.totalorder %s22, %s23
    %p34 = scmp.eq.s32.totalorder %s14, 0
    %p35 = por %p33, %p34
    %p36 = scmp.ne.s32.totalorder %s22, %s23
    %p37 = scmp.eq.s32.totalorder %s15, 1
    %p38 = por %p36, %p37
    %p40 = scmp.ne.s32.totalorder %s23, %s39
    %p41 = scmp.eq.s32.totalorder %s15, 0
    %p42 = por %p40, %p41
    %s44 = sadd.s32 %s43, 1
    %p47 = scmp.eq.s32.totalorder %s9, 1
    %p48 = scmp.ne.s32.totalorder %s43, %s45
    %p49 = scmp.eq.s32.totalorder %s9, 0
    %p50 = por %p48, %p49
    %p51 = scmp.ne.s32.totalorder %s43, %s45
    %p52 = scmp.eq.s32.totalorder %s14, 1
    %p53 = por %p51, %p52
    %p54 = scmp.ne.s32.totalorder %s45, %s46
    %p55 = scmp.eq.s32.totalorder %s14, 0
    %p56 = por %p54, %p55
    %p57 = scmp.ne.s32.totalorder %s45, %s46
    %p58 = scmp.eq.s32.totalorder %s15, 1
    %p59 = por %p57, %p58
    %p61 = scmp.ne.s32.totalorder %s46, %s60
    %p62 = scmp.eq.s32.totalorder %s15, 0
    %p63 = por %p61, %p62
    %s65 = sadd.s32 %s64, 1
    %p68 = scmp.eq.s32.totalorder %s9, 1
    %p69 = scmp.ne.s32.totalorder %s64, %s66
    %p70 = scmp.eq.s32.totalorder %s9, 0
    %p71 = por %p69, %p70
    %p72 = scmp.ne.s32.totalorder %s64, %s66
    %p73 = scmp.eq.s32.totalorder %s14, 1
    %p74 = por %p72, %p73
    %p75 = scmp.ne.s32.totalorder %s66, %s67
    %p76 = scmp.eq.s32.totalorder %s14, 0
    %p77 = por %p75, %p76
    %p78 = scmp.ne.s32.totalorder %s66, %s67
    %p79 = scmp.eq.s32.totalorder %s15, 1
    %p80 = por %p78, %p79
    %p82 = scmp.ne.s32.totalorder %s67, %s81
    %p83 = scmp.eq.s32.totalorder %s15, 0
    %p84 = por %p82, %p83
    %s85 = ssub.s32 %s9, %s16
    %p86 = scmp.eq.s32.totalorder %s85, 0
    %s88 = sadd.s32 %s87, 1
    %s89 = scalar_select %p86, %s87, %s88
    %p92 = pneg %p86
    %p93 = scmp.eq.s32.totalorder %s9, 1
    %p94 = por %p92, %p93
    %p95 = scmp.ne.s32.totalorder %s87, %s90
    %p96 = scmp.eq.s32.totalorder %s9, 0
    %p97 = por %p95, %p96
    %p98 = scmp.ne.s32.totalorder %s87, %s90
    %p99 = scmp.eq.s32.totalorder %s14, 1
    %p100 = por %p98, %p99
    %p101 = scmp.ne.s32.totalorder %s90, %s91
    %p102 = scmp.eq.s32.totalorder %s14, 0
    %p103 = por %p101, %p102
    %p104 = scmp.ne.s32.totalorder %s90, %s91
    %p105 = scmp.eq.s32.totalorder %s15, 1
    %p106 = por %p104, %p105
    %p108 = scmp.ne.s32.totalorder %s91, %s107
    %p109 = scmp.eq.s32.totalorder %s15, 0
    %p110 = por %p108, %p109
    %p111 = scmp.le.s32.totalorder 1, %s9
    %p112 = scmp.lt.s32.totalorder %s9, 3
    %p113 = pnand %p111, %p112
    %p114 = pneg %p113
    // Predicated region
    $region9: #{dense_block_forward.1} parent=5 // pred_check
      _
    $region10: #{dense_block_forward.1} parent=5 // pred_check_branch
      %116 = sbr.rel (%p113) target = $region12
    $region11: #{dense_block_forward.1} parent=5 // pred_region
      %s117 = ssub.s32 %s9, 1
      // Predicated region
      $region13: #{dense_block_forward.1} parent=11 // pred_check
        %p118 = pneg %p56
      $region14: #{dense_block_forward.1} parent=11 // pred_check_branch
        %120 = sbr.rel (%p118) target = $region16
      $region15: #{dense_block_forward.1} parent=11 // pred_region
        _
      $region16: #{dense_block_forward.1} parent=11 // pred_fallthru
        _
      // Predicated region
      $region17: #{dense_block_forward.1} parent=11 // pred_check
        %p121 = pneg %p77
      $region18: #{dense_block_forward.1} parent=11 // pred_check_branch
        %123 = sbr.rel (%p121) target = $region20
      $region19: #{dense_block_forward.1} parent=11 // pred_region
        _
      $region20: #{dense_block_forward.1} parent=11 // pred_fallthru
        _
    $region12: #{dense_block_forward.1} parent=5 // pred_fallthru
      _
    %p124 = scmp.lt.s32.totalorder %s9, 2
    // Predicated region
    $region21: #{dense_block_forward.1} parent=5 // pred_check
      %p125 = pneg %p124
    $region22: #{dense_block_forward.1} parent=5 // pred_check_branch
      %127 = sbr.rel (%p125) target = $region24
    $region23: #{dense_block_forward.1} parent=5 // pred_region
      // Predicated region
      $region25: #{dense_block_forward.1} parent=23 // pred_check
        %p128 = pneg %p29
      $region26: #{dense_block_forward.1} parent=23 // pred_check_branch
        %130 = sbr.rel (%p128) target = $region28
      $region27: #{dense_block_forward.1} parent=23 // pred_region
        %p131 = scmp.lt.s32.totalorder %s9, 1
        %s132 = scalar_select %p131, %s9, 1
        %s133 = smul.addr %s132, 3
        %s134 = smul.addr %s133, 4
        %s135 = scalar_lea.vmem %s0, %s134
      $region28: #{dense_block_forward.1} parent=23 // pred_fallthru
        _
    $region24: #{dense_block_forward.1} parent=5 // pred_fallthru
      _
    %p136 = scmp.le.s32.totalorder 1, %s9
    %p137 = scmp.lt.s32.totalorder %s9, 3
    %p138 = pnand %p136, %p137
    %p139 = pneg %p138
    // Predicated region
    $region29: #{dense_block_forward.1} parent=5 // pred_check
      _
    $region30: #{dense_block_forward.1} parent=5 // pred_check_branch
      %141 = sbr.rel (%p138) target = $region32
    $region31: #{dense_block_forward.1} parent=5 // pred_region
      %s142 = ssub.s32 %s9, 1
      %p143 = scmp.lt.s32.totalorder %s14, 1
      %s144 = scalar_select %p143, %s14, 1
      %s145 = smul.addr %s144, 3
      %s146 = smul.addr %s145, 4
      %s147 = scalar_lea.vmem %s0, %s146
      %p148 = pneg %p35
      %p149 = pneg %p32
      %p150 = pneg %p56
      %p151 = pneg %p53
      %p152 = pneg %p77
      %p153 = pneg %p74
      %p154 = pneg %p103
      %p155 = pneg %p100
      %p156 = scmp.lt.s32.totalorder %s14, 1
      %s157 = scalar_select %p156, %s14, 1
      %s158 = smul.addr %s157, 4
      %s159 = smul.addr %s158, 8
      %s160 = scalar_lea.vmem %s3, %s159
      %p161 = scmp.lt.s32.totalorder %s14, 1
      %s162 = scalar_select %p161, %s14, 1
      %s163 = smul.addr %s162, 3
      %s164 = smul.addr %s163, 4
      %s165 = scalar_lea.vmem %s0, %s164
      %p166 = scmp.lt.s32.totalorder %s14, 1
      %s167 = scalar_select %p166, %s14, 1
      %s168 = smul.addr %s167, 4
      %s169 = smul.addr %s168, 8
      %s170 = scalar_lea.vmem %s3, %s169
      %171 = vst [vmem:[#allocation2] sm:$0xff] 0.0
      %172 = vst [vmem:[#allocation2 + $0x8] sm:$0xff] 0.0
      %vm173 = vcmask 556032
      %174 = vst.msk [vmem:[#allocation2 + $0x10] sm:$0xff] %vm173, 0.0
      %175 = vst [vmem:[#allocation2 + $0x18] sm:$0xff] 0.0
      %176 = vst [vmem:[#allocation2 + $0x20] sm:$0xff] 0.0
      %177 = vst.msk [vmem:[#allocation2 + $0x28] sm:$0xff] %vm173, 0.0
      %v178 = vld [vmem:[%s165] sm:$0xff]
      %v179 = vld [vmem:[%s165 + $0x8] sm:$0xf]
      %v181 = vcombine.high %v178, %v178
      %183 = vst [vmem:[#allocation2] sm:$0xf] %v178
      %184 = vst [vmem:[#allocation2 + $0x8] sm:$0xf] %v181
      %vm185 = vcmask 551936
      %186 = vst.msk [vmem:[#allocation2 + $0x10] sm:$0xf] %vm185, %v179
      %v187 = vlaneseq
      %v188 = vand.u32 %v187, 127
      %v189 = vadd.s32 %v188, 128
      %v190 = vadd.s32 %v188, 256
      %vm191 = vcmp.lt.s32.totalorder %v188, 16
      %vm192 = vcmp.lt.s32.totalorder %v189, 16
      %vm193 = vcmp.lt.s32.totalorder %v190, 16
      %vm194 = vcmp.ge.s32.totalorder %v188, 18
      %vm195 = vcmp.ge.s32.totalorder %v189, 18
      %vm196 = vcmp.ge.s32.totalorder %v190, 18
      %vm197 = vcmp.lt.s32.totalorder %v188, 34
      %vm198 = vcmp.lt.s32.totalorder %v189, 34
      %vm199 = vcmp.lt.s32.totalorder %v190, 34
      %vm200 = vmand %vm194, %vm197
      %vm201 = vmand %vm195, %vm198
      %vm202 = vmand %vm196, %vm199
      %vm203 = vmor %vm191, %vm200
      %vm204 = vmor %vm192, %vm201
      %vm205 = vmor %vm193, %vm202
      %vm206 = vcmp.ge.s32.totalorder %v188, 36
      %vm207 = vcmp.ge.s32.totalorder %v189, 36
      %vm208 = vcmp.ge.s32.totalorder %v190, 36
      %vm209 = vcmp.lt.s32.totalorder %v188, 52
      %vm210 = vcmp.lt.s32.totalorder %v189, 52
      %vm211 = vcmp.lt.s32.totalorder %v190, 52
      %vm212 = vmand %vm206, %vm209
      %vm213 = vmand %vm207, %vm210
      %vm214 = vmand %vm208, %vm211
      %vm215 = vmor %vm203, %vm212
      %vm216 = vmor %vm204, %vm213
      %vm217 = vmor %vm205, %vm214
      %vm218 = vcmp.ge.s32.totalorder %v188, 54
      %vm219 = vcmp.ge.s32.totalorder %v189, 54
      %vm220 = vcmp.ge.s32.totalorder %v190, 54
      %vm221 = vcmp.lt.s32.totalorder %v188, 70
      %vm222 = vcmp.lt.s32.totalorder %v189, 70
      %vm223 = vcmp.lt.s32.totalorder %v190, 70
      %vm224 = vmand %vm218, %vm221
      %vm225 = vmand %vm219, %vm222
      %vm226 = vmand %vm220, %vm223
      %vm227 = vmor %vm215, %vm224
      %vm228 = vmor %vm216, %vm225
      %vm229 = vmor %vm217, %vm226
      %vm230 = vcmp.ge.s32.totalorder %v188, 72
      %vm231 = vcmp.ge.s32.totalorder %v189, 72
      %vm232 = vcmp.ge.s32.totalorder %v190, 72
      %vm233 = vcmp.lt.s32.totalorder %v188, 88
      %vm234 = vcmp.lt.s32.totalorder %v189, 88
      %vm235 = vcmp.lt.s32.totalorder %v190, 88
      %vm236 = vmand %vm230, %vm233
      %vm237 = vmand %vm231, %vm234
      %vm238 = vmand %vm232, %vm235
      %vm239 = vmor %vm227, %vm236
      %vm240 = vmor %vm228, %vm237
      %vm241 = vmor %vm229, %vm238
      %vm242 = vcmp.ge.s32.totalorder %v188, 90
      %vm243 = vcmp.ge.s32.totalorder %v189, 90
      %vm244 = vcmp.ge.s32.totalorder %v190, 90
      %vm245 = vcmp.lt.s32.totalorder %v188, 106
      %vm246 = vcmp.lt.s32.totalorder %v189, 106
      %vm247 = vcmp.lt.s32.totalorder %v190, 106
      %vm248 = vmand %vm242, %vm245
      %vm249 = vmand %vm243, %vm246
      %vm250 = vmand %vm244, %vm247
      %vm251 = vmor %vm239, %vm248
      %vm252 = vmor %vm240, %vm249
      %vm253 = vmor %vm241, %vm250
      %vm254 = vcmp.ge.s32.totalorder %v188, 108
      %vm255 = vcmp.ge.s32.totalorder %v189, 108
      %vm256 = vcmp.ge.s32.totalorder %v190, 108
      %vm257 = vcmp.lt.s32.totalorder %v188, 124
      %vm258 = vcmp.lt.s32.totalorder %v189, 124
      %vm259 = vcmp.lt.s32.totalorder %v190, 124
      %vm260 = vmand %vm254, %vm257
      %vm261 = vmand %vm255, %vm258
      %vm262 = vmand %vm256, %vm259
      %vm263 = vmor %vm251, %vm260
      %vm264 = vmor %vm252, %vm261
      %vm265 = vmor %vm253, %vm262
      %vm266 = vcmp.ge.s32.totalorder %v188, 126
      %vm267 = vcmp.ge.s32.totalorder %v189, 126
      %vm268 = vcmp.ge.s32.totalorder %v190, 126
      %vm269 = vcmp.lt.s32.totalorder %v188, 142
      %vm270 = vcmp.lt.s32.totalorder %v189, 142
      %vm271 = vcmp.lt.s32.totalorder %v190, 142
      %vm272 = vmand %vm266, %vm269
      %vm273 = vmand %vm267, %vm270
      %vm274 = vmand %vm268, %vm271
      %vm275 = vmor %vm263, %vm272
      %vm276 = vmor %vm264, %vm273
      %vm277 = vmor %vm265, %vm274
      %vm278 = vcmp.ge.s32.totalorder %v188, 144
      %vm279 = vcmp.ge.s32.totalorder %v189, 144
      %vm280 = vcmp.ge.s32.totalorder %v190, 144
      %vm281 = vcmp.lt.s32.totalorder %v188, 160
      %vm282 = vcmp.lt.s32.totalorder %v189, 160
      %vm283 = vcmp.lt.s32.totalorder %v190, 160
      %vm284 = vmand %vm278, %vm281
      %vm285 = vmand %vm279, %vm282
      %vm286 = vmand %vm280, %vm283
      %vm287 = vmor %vm275, %vm284
      %vm288 = vmor %vm276, %vm285
      %vm289 = vmor %vm277, %vm286
      %vm290 = vcmp.ge.s32.totalorder %v188, 162
      %vm291 = vcmp.ge.s32.totalorder %v189, 162
      %vm292 = vcmp.ge.s32.totalorder %v190, 162
      %vm293 = vcmp.lt.s32.totalorder %v188, 178
      %vm294 = vcmp.lt.s32.totalorder %v189, 178
      %vm295 = vcmp.lt.s32.totalorder %v190, 178
      %vm296 = vmand %vm290, %vm293
      %vm297 = vmand %vm291, %vm294
      %vm298 = vmand %vm292, %vm295
      %vm299 = vmor %vm287, %vm296
      %vm300 = vmor %vm288, %vm297
      %vm301 = vmor %vm289, %vm298
      %vm302 = vcmp.ge.s32.totalorder %v188, 180
      %vm303 = vcmp.ge.s32.totalorder %v189, 180
      %vm304 = vcmp.ge.s32.totalorder %v190, 180
      %vm305 = vcmp.lt.s32.totalorder %v188, 196
      %vm306 = vcmp.lt.s32.totalorder %v189, 196
      %vm307 = vcmp.lt.s32.totalorder %v190, 196
      %vm308 = vmand %vm302, %vm305
      %vm309 = vmand %vm303, %vm306
      %vm310 = vmand %vm304, %vm307
      %vm311 = vmor %vm299, %vm308
      %vm312 = vmor %vm300, %vm309
      %vm313 = vmor %vm301, %vm310
      %vm314 = vcmp.ge.s32.totalorder %v188, 198
      %vm315 = vcmp.ge.s32.totalorder %v189, 198
      %vm316 = vcmp.ge.s32.totalorder %v190, 198
      %vm317 = vcmp.lt.s32.totalorder %v188, 214
      %vm318 = vcmp.lt.s32.totalorder %v189, 214
      %vm319 = vcmp.lt.s32.totalorder %v190, 214
      %vm320 = vmand %vm314, %vm317
      %vm321 = vmand %vm315, %vm318
      %vm322 = vmand %vm316, %vm319
      %vm323 = vmor %vm311, %vm320
      %vm324 = vmor %vm312, %vm321
      %vm325 = vmor %vm313, %vm322
      %vm326 = vcmp.ge.s32.totalorder %v188, 216
      %vm327 = vcmp.ge.s32.totalorder %v189, 216
      %vm328 = vcmp.ge.s32.totalorder %v190, 216
      %vm329 = vcmp.lt.s32.totalorder %v188, 232
      %vm330 = vcmp.lt.s32.totalorder %v189, 232
      %vm331 = vcmp.lt.s32.totalorder %v190, 232
      %vm332 = vmand %vm326, %vm329
      %vm333 = vmand %vm327, %vm330
      %vm334 = vmand %vm328, %vm331
      %vm335 = vmor %vm323, %vm332
      %vm336 = vmor %vm324, %vm333
      %vm337 = vmor %vm325, %vm334
      %vm338 = vcmp.ge.s32.totalorder %v188, 234
      %vm339 = vcmp.ge.s32.totalorder %v189, 234
      %vm340 = vcmp.ge.s32.totalorder %v190, 234
      %vm341 = vcmp.lt.s32.totalorder %v188, 250
      %vm342 = vcmp.lt.s32.totalorder %v189, 250
      %vm343 = vcmp.lt.s32.totalorder %v190, 250
      %vm344 = vmand %vm338, %vm341
      %vm345 = vmand %vm339, %vm342
      %vm346 = vmand %vm340, %vm343
      %vm347 = vmor %vm335, %vm344
      %vm348 = vmor %vm336, %vm345
      %vm349 = vmor %vm337, %vm346
      %vm350 = vcmp.ge.s32.totalorder %v188, 252
      %vm351 = vcmp.ge.s32.totalorder %v189, 252
      %vm352 = vcmp.ge.s32.totalorder %v190, 252
      %vm353 = vcmp.lt.s32.totalorder %v188, 268
      %vm354 = vcmp.lt.s32.totalorder %v189, 268
      %vm355 = vcmp.lt.s32.totalorder %v190, 268
      %vm356 = vmand %vm350, %vm353
      %vm357 = vmand %vm351, %vm354
      %vm358 = vmand %vm352, %vm355
      %vm359 = vmor %vm347, %vm356
      %vm360 = vmor %vm348, %vm357
      %vm361 = vmor %vm349, %vm358
      %vm362 = vcmp.ge.s32.totalorder %v188, 270
      %vm363 = vcmp.ge.s32.totalorder %v189, 270
      %vm364 = vcmp.ge.s32.totalorder %v190, 270
      %vm365 = vcmp.lt.s32.totalorder %v188, 286
      %vm366 = vcmp.lt.s32.totalorder %v189, 286
      %vm367 = vcmp.lt.s32.totalorder %v190, 286
      %vm368 = vmand %vm362, %vm365
      %vm369 = vmand %vm363, %vm366
      %vm370 = vmand %vm364, %vm367
      %vm371 = vmor %vm359, %vm368
      %vm372 = vmor %vm360, %vm369
      %vm373 = vmor %vm361, %vm370
      %v374 = vsel %vm371, 1, 0
      %v375 = vsel %vm372, 1, 0
      %v376 = vsel %vm373, 1, 0
      %v377 = vcvt.s32.f32 %v374
      %v378 = vcvt.s32.f32 %v375
      %v379 = vcvt.s32.f32 %v376
      %v380 = vld [vmem:[#allocation2] sm:$0xff]
      %v381 = vld [vmem:[#allocation2 + $0x8] sm:$0xff]
      %v382 = vld [vmem:[#allocation2 + $0x10] sm:$0xff]
      %v383 = vld [vmem:[#allocation2 + $0x18] sm:$0xff]
      %v384 = vld [vmem:[#allocation2 + $0x20] sm:$0xff]
      %v385 = vld [vmem:[#allocation2 + $0x28] sm:$0xff]
      %392 = vrot.lane.b32.xlu0 %v380, 127
      %v393 = vpop.permute.xlu0 %392
      %394 = vrot.lane.b32.xlu0 %v381, 127
      %v395 = vpop.permute.xlu0 %394
      %396 = vrot.lane.b32.xlu0 %v382, 127
      %v397 = vpop.permute.xlu0 %396
      %398 = vrot.lane.b32.xlu0 %v383, 127
      %v399 = vpop.permute.xlu0 %398
      %400 = vrot.lane.b32.xlu0 %v384, 127
      %v401 = vpop.permute.xlu0 %400
      %402 = vrot.lane.b32.xlu0 %v385, 127
      %v403 = vpop.permute.xlu0 %402
      %vm404 = vcmask 1039360
      %v405 = vsel %vm404, %v393, %v395
      %v406 = vsel %vm404, %v395, %v397
      %v407 = vsel %vm404, %v399, %v401
      %v408 = vsel %vm404, %v401, %v403
      %415 = vrot.lane.b32.xlu0 %v380, 126
      %v416 = vpop.permute.xlu0 %415
      %417 = vrot.lane.b32.xlu0 %v381, 126
      %v418 = vpop.permute.xlu0 %417
      %419 = vrot.lane.b32.xlu0 %v382, 126
      %v420 = vpop.permute.xlu0 %419
      %421 = vrot.lane.b32.xlu0 %v383, 126
      %v422 = vpop.permute.xlu0 %421
      %423 = vrot.lane.b32.xlu0 %v384, 126
      %v424 = vpop.permute.xlu0 %423
      %425 = vrot.lane.b32.xlu0 %v385, 126
      %v426 = vpop.permute.xlu0 %425
      %vm427 = vcmask 1031168
      %v428 = vsel %vm427, %v416, %v418
      %v429 = vsel %vm427, %v418, %v420
      %v430 = vsel %vm427, %v422, %v424
      %v431 = vsel %vm427, %v424, %v426
      %438 = vrot.lane.b32.xlu0 %v380, 110
      %v439 = vpop.permute.xlu0 %438
      %440 = vrot.lane.b32.xlu0 %v381, 110
      %v441 = vpop.permute.xlu0 %440
      %442 = vrot.lane.b32.xlu0 %v382, 110
      %v443 = vpop.permute.xlu0 %442
      %444 = vrot.lane.b32.xlu0 %v383, 110
      %v445 = vpop.permute.xlu0 %444
      %446 = vrot.lane.b32.xlu0 %v384, 110
      %v447 = vpop.permute.xlu0 %446
      %448 = vrot.lane.b32.xlu0 %v385, 110
      %v449 = vpop.permute.xlu0 %448
      %vm450 = vcmask 900096
      %v451 = vsel %vm450, %v439, %v441
      %v452 = vsel %vm450, %v441, %v443
      %v453 = vsel %vm450, %v445, %v447
      %v454 = vsel %vm450, %v447, %v449
      %461 = vrot.lane.b32.xlu0 %v380, 109
      %v462 = vpop.permute.xlu0 %461
      %463 = vrot.lane.b32.xlu0 %v381, 109
      %v464 = vpop.permute.xlu0 %463
      %465 = vrot.lane.b32.xlu0 %v382, 109
      %v466 = vpop.permute.xlu0 %465
      %467 = vrot.lane.b32.xlu0 %v383, 109
      %v468 = vpop.permute.xlu0 %467
      %469 = vrot.lane.b32.xlu0 %v384, 109
      %v470 = vpop.permute.xlu0 %469
      %471 = vrot.lane.b32.xlu0 %v385, 109
      %v472 = vpop.permute.xlu0 %471
      %vm473 = vcmask 891904
      %v474 = vsel %vm473, %v462, %v464
      %v475 = vsel %vm473, %v464, %v466
      %v476 = vsel %vm473, %v468, %v470
      %v477 = vsel %vm473, %v470, %v472
      %484 = vrot.lane.b32.xlu0 %v380, 108
      %v485 = vpop.permute.xlu0 %484
      %486 = vrot.lane.b32.xlu0 %v381, 108
      %v487 = vpop.permute.xlu0 %486
      %488 = vrot.lane.b32.xlu0 %v382, 108
      %v489 = vpop.permute.xlu0 %488
      %490 = vrot.lane.b32.xlu0 %v383, 108
      %v491 = vpop.permute.xlu0 %490
      %492 = vrot.lane.b32.xlu0 %v384, 108
      %v493 = vpop.permute.xlu0 %492
      %494 = vrot.lane.b32.xlu0 %v385, 108
      %v495 = vpop.permute.xlu0 %494
      %vm496 = vcmask 883712
      %v497 = vsel %vm496, %v485, %v487
      %v498 = vsel %vm496, %v487, %v489
      %v499 = vsel %vm496, %v491, %v493
      %v500 = vsel %vm496, %v493, %v495
      %507 = vrot.lane.b32.xlu0 %v380, 92
      %v508 = vpop.permute.xlu0 %507
      %509 = vrot.lane.b32.xlu0 %v381, 92
      %v510 = vpop.permute.xlu0 %509
      %511 = vrot.lane.b32.xlu0 %v382, 92
      %v512 = vpop.permute.xlu0 %511
      %513 = vrot.lane.b32.xlu0 %v383, 92
      %v514 = vpop.permute.xlu0 %513
      %515 = vrot.lane.b32.xlu0 %v384, 92
      %v516 = vpop.permute.xlu0 %515
      %517 = vrot.lane.b32.xlu0 %v385, 92
      %v518 = vpop.permute.xlu0 %517
      %vm519 = vcmask 752640
      %v520 = vsel %vm519, %v508, %v510
      %v521 = vsel %vm519, %v510, %v512
      %v522 = vsel %vm519, %v514, %v516
      %v523 = vsel %vm519, %v516, %v518
      %530 = vrot.lane.b32.xlu0 %v380, 91
      %v531 = vpop.permute.xlu0 %530
      %532 = vrot.lane.b32.xlu0 %v381, 91
      %v533 = vpop.permute.xlu0 %532
      %534 = vrot.lane.b32.xlu0 %v382, 91
      %v535 = vpop.permute.xlu0 %534
      %536 = vrot.lane.b32.xlu0 %v383, 91
      %v537 = vpop.permute.xlu0 %536
      %538 = vrot.lane.b32.xlu0 %v384, 91
      %v539 = vpop.permute.xlu0 %538
      %540 = vrot.lane.b32.xlu0 %v385, 91
      %v541 = vpop.permute.xlu0 %540
      %vm542 = vcmask 744448
      %v543 = vsel %vm542, %v531, %v533
      %v544 = vsel %vm542, %v533, %v535
      %v545 = vsel %vm542, %v537, %v539
      %v546 = vsel %vm542, %v539, %v541
      %553 = vrot.lane.b32.xlu0 %v380, 90
      %v554 = vpop.permute.xlu0 %553
      %555 = vrot.lane.b32.xlu0 %v381, 90
      %v556 = vpop.permute.xlu0 %555
      %557 = vrot.lane.b32.xlu0 %v382, 90
      %v558 = vpop.permute.xlu0 %557
      %559 = vrot.lane.b32.xlu0 %v383, 90
      %v560 = vpop.permute.xlu0 %559
      %561 = vrot.lane.b32.xlu0 %v384, 90
      %v562 = vpop.permute.xlu0 %561
      %563 = vrot.lane.b32.xlu0 %v385, 90
      %v564 = vpop.permute.xlu0 %563
      %vm565 = vcmask 736256
      %v566 = vsel %vm565, %v554, %v556
      %v567 = vsel %vm565, %v556, %v558
      %v568 = vsel %vm565, %v560, %v562
      %v569 = vsel %vm565, %v562, %v564
      %v576 = vld [vmem:[%s1] sm:$0xff]
      %v577 = vld [vmem:[%s2] sm:$0xf]
      %579 = vset.pattern.permute.xlu0 0
      %580 = vperm.xlu0 %579, %v577
      %v581 = vpop.permute.xlu0 %580
      %v584 = vcombine.high %v576, %v576
      %vm585 = vcmask 130048
      %v586 = vsel %vm585, %v584, 0
      %588 = vmatprep.subr.mxu0 %v381
      %589 = vmatpush1.msra.mxu0 %v380
      %590 = vmatprep.subr.mxu0 %v384
      %591 = vmatpush1.msra.mxu0 %v383
      %592 = vmatprep.subr.mxu0 %v406
      %593 = vmatpush1.msra.mxu0 %v405
      %594 = vmatprep.subr.mxu0 %v408
      %595 = vmatpush1.msra.mxu0 %v407
      %596 = vmatprep.subr.mxu0 %v429
      %597 = vmatpush1.msra.mxu0 %v428
      %598 = vmatprep.subr.mxu0 %v431
      %599 = vmatpush1.msra.mxu0 %v430
      %600 = vmatprep.subr.mxu0 %v452
      %601 = vmatpush1.msra.mxu0 %v451
      %602 = vmatprep.subr.mxu0 %v454
      %603 = vmatpush1.msra.mxu0 %v453
      %604 = vmatprep.subr.mxu0 %v475
      %605 = vmatpush1.msra.mxu0 %v474
      %606 = vmatprep.subr.mxu0 %v477
      %607 = vmatpush1.msra.mxu0 %v476
      %608 = vmatprep.subr.mxu0 %v498
      %609 = vmatpush1.msra.mxu0 %v497
      %610 = vmatprep.subr.mxu0 %v500
      %611 = vmatpush1.msra.mxu0 %v499
      %612 = vmatprep.subr.mxu0 %v521
      %613 = vmatpush1.msra.mxu0 %v520
      %614 = vmatprep.subr.mxu0 %v523
      %615 = vmatpush1.msra.mxu0 %v522
      %616 = vmatprep.subr.mxu0 %v544
      %617 = vmatpush1.msra.mxu0 %v543
      %618 = vmatprep.subr.mxu0 %v546
      %619 = vmatpush1.msra.mxu0 %v545
      %620 = vmatprep.subr.mxu0 %v567
      %621 = vmatpush1.msra.mxu0 %v566
      %622 = vmatprep.subr.mxu0 %v569
      %623 = vmatpush1.msra.mxu0 %v568
      %624 = vmatprep.subr.mxu0 0.0
      %625 = vmatpush1.msra.mxu0 0.0
      %626 = vmatprep.subr.mxu0 0.0
      %627 = vmatpush1.msra.mxu0 0.0
      %628 = vmatprep.subr.mxu0 0.0
      %629 = vmatpush1.msra.mxu0 0.0
      %630 = vmatprep.subr.mxu0 0.0
      %631 = vmatpush1.msra.mxu0 0.0
      %632 = vmatprep.subr.mxu0 0.0
      %633 = vmatpush1.msra.mxu0 0.0
      %634 = vmatprep.subr.mxu0 0.0
      %635 = vmatpush1.msra.mxu0 0.0
      %636 = vmatprep.subr.mxu0 0.0
      %637 = vmatpush1.msra.mxu0 0.0
      %638 = vmatprep.subr.mxu0 0.0
      %639 = vmatpush1.msra.mxu0 0.0
      %640 = vmatprep.subr.mxu0 0.0
      %641 = vmatpush1.msra.mxu0 0.0
      %642 = vmatprep.subr.mxu0 0.0
      %643 = vmatpush1.msra.mxu0 0.0
      %644 = vmatprep.subr.mxu0 0.0
      %645 = vmatpush1.msra.mxu0 0.0
      %646 = vmatprep.subr.mxu0 0.0
      %647 = vmatpush1.msra.mxu0 0.0
      %648 = vmatprep.subr.mxu0 0.0
      %649 = vmatpush1.msra.mxu0 0.0
      %650 = vmatprep.subr.mxu0 0.0
      %651 = vmatpush1.msra.mxu0 0.0
      %652 = vmatprep.mubr.f32.mxu0 %v586
      %653 = vmatmul.mubr.f32.gmra.mrb[0].mxu0 %v576
      %v654 = vpop.f32.mrb[0].mxu0
      %v655 = vadd.f32 %v581, %v654
      %v656 = vpop.f32.mrb[0].mxu0
      %v657 = vadd.f32 %v581, %v656
      %658 = vdwg.mxu0
      %659 = vmatprep.subr.mxu0 0.0
      %660 = vmatpush1.msra.mxu0 %v382
      %661 = vmatprep.subr.mxu0 0.0
      %662 = vmatpush1.msra.mxu0 %v385
      %663 = vmatprep.subr.mxu0 0.0
      %664 = vmatpush1.msra.mxu0 %v397
      %665 = vmatprep.subr.mxu0 0.0
      %666 = vmatpush1.msra.mxu0 %v403
      %667 = vmatprep.subr.mxu0 0.0
      %668 = vmatpush1.msra.mxu0 %v420
      %669 = vmatprep.subr.mxu0 0.0
      %670 = vmatpush1.msra.mxu0 %v426
      %671 = vmatprep.subr.mxu0 0.0
      %672 = vmatpush1.msra.mxu0 %v443
      %673 = vmatprep.subr.mxu0 0.0
      %674 = vmatpush1.msra.mxu0 %v449
      %675 = vmatprep.subr.mxu0 0.0
      %676 = vmatpush1.msra.mxu0 %v466
      %677 = vmatprep.subr.mxu0 0.0
      %678 = vmatpush1.msra.mxu0 %v472
      %679 = vmatprep.subr.mxu0 0.0
      %680 = vmatpush1.msra.mxu0 %v489
      %681 = vmatprep.subr.mxu0 0.0
      %682 = vmatpush1.msra.mxu0 %v495
      %683 = vmatprep.subr.mxu0 0.0
      %684 = vmatpush1.msra.mxu0 %v512
      %685 = vmatprep.subr.mxu0 0.0
      %686 = vmatpush1.msra.mxu0 %v518
      %687 = vmatprep.subr.mxu0 0.0
      %688 = vmatpush1.msra.mxu0 %v535
      %689 = vmatprep.subr.mxu0 0.0
      %690 = vmatpush1.msra.mxu0 %v541
      %691 = vmatprep.subr.mxu0 0.0
      %692 = vmatpush1.msra.mxu0 %v558
      %693 = vmatprep.subr.mxu0 0.0
      %694 = vmatpush1.msra.mxu0 %v564
      %695 = vmatprep.subr.mxu0 0.0
      %696 = vmatpush1.msra.mxu0 0.0
      %697 = vmatprep.subr.mxu0 0.0
      %698 = vmatpush1.msra.mxu0 0.0
      %699 = vmatprep.subr.mxu0 0.0
      %700 = vmatpush1.msra.mxu0 0.0
      %701 = vmatprep.subr.mxu0 0.0
      %702 = vmatpush1.msra.mxu0 0.0
      %703 = vmatprep.subr.mxu0 0.0
      %704 = vmatpush1.msra.mxu0 0.0
      %705 = vmatprep.subr.mxu0 0.0
      %706 = vmatpush1.msra.mxu0 0.0
      %707 = vmatprep.subr.mxu0 0.0
      %708 = vmatpush1.msra.mxu0 0.0
      %709 = vmatprep.subr.mxu0 0.0
      %710 = vmatpush1.msra.mxu0 0.0
      %711 = vmatprep.subr.mxu0 0.0
      %712 = vmatpush1.msra.mxu0 0.0
      %713 = vmatprep.subr.mxu0 0.0
      %714 = vmatpush1.msra.mxu0 0.0
      %715 = vmatprep.subr.mxu0 0.0
      %716 = vmatpush1.msra.mxu0 0.0
      %717 = vmatprep.subr.mxu0 0.0
      %718 = vmatpush1.msra.mxu0 0.0
      %719 = vmatprep.subr.mxu0 0.0
      %720 = vmatpush1.msra.mxu0 0.0
      %721 = vmatprep.subr.mxu0 0.0
      %722 = vmatpush1.msra.mxu0 0.0
      %723 = vmatprep.mubr.f32.mxu0 %v586
      %724 = vmatmul.mubr.f32.gmra.mrb[0].mxu0 %v576
      %v725 = vpop.f32.mrb[0].mxu0
      %v726 = vadd.f32 %v581, %v725
      %v727 = vpop.f32.mrb[0].mxu0
      %728 = vdwg.mxu0
      %v729 = vmax.f32 %v655, 0.0
      %v730 = vmax.f32 %v657, 0.0
      %v731 = vmax.f32 %v726, 0.0
      %v732 = vmul.f32 %v729, %v377
      %v733 = vmul.f32 %v730, %v378
      %v734 = vmul.f32 %v731, %v379
      %v738 = vrot.slane %v732, 4
      %v739 = vrot.slane %v733, 4
      %v740 = vrot.slane %v734, 4
      %741 = vrot.lane.b32.xlu0 %v738, 19
      %v742 = vpop.permute.xlu0 %741
      %743 = vrot.lane.b32.xlu0 %v739, 19
      %v744 = vpop.permute.xlu0 %743
      %745 = vrot.lane.b32.xlu0 %v740, 19
      %v746 = vpop.permute.xlu0 %745
      %vm747 = vcmask 154624
      %v748 = vsel %vm747, %v742, %v744
      %v749 = vsel %vm747, %v744, %v746
      %vm753 = vcmask 1047708
      %754 = vst.msk [vmem:[#allocation2] sm:$0xf0] %vm753, %v742
      %755 = vst [vmem:[#allocation2 + $0x8] sm:$0xf0] %v748
      %vm756 = vcmask 400388
      %757 = vst.msk [vmem:[#allocation2 + $0x10] sm:$0xf0] %vm756, %v749
      %v758 = vld [vmem:[#allocation2] sm:$0xff]
      %v759 = vld [vmem:[#allocation2 + $0x8] sm:$0xff]
      %v760 = vld [vmem:[#allocation2 + $0x10] sm:$0xff]
      %v761 = vld [vmem:[#allocation2 + $0x18] sm:$0xff]
      %v762 = vld [vmem:[#allocation2 + $0x20] sm:$0xff]
      %v763 = vld [vmem:[#allocation2 + $0x28] sm:$0xff]
      %770 = vrot.lane.b32.xlu0 %v758, 127
      %v771 = vpop.permute.xlu0 %770
      %772 = vrot.lane.b32.xlu0 %v759, 127
      %v773 = vpop.permute.xlu0 %772
      %774 = vrot.lane.b32.xlu0 %v760, 127
      %v775 = vpop.permute.xlu0 %774
      %776 = vrot.lane.b32.xlu0 %v761, 127
      %v777 = vpop.permute.xlu0 %776
      %778 = vrot.lane.b32.xlu0 %v762, 127
      %v779 = vpop.permute.xlu0 %778
      %780 = vrot.lane.b32.xlu0 %v763, 127
      %v781 = vpop.permute.xlu0 %780
      %v782 = vsel %vm404, %v771, %v773
      %v783 = vsel %vm404, %v773, %v775
      %v784 = vsel %vm404, %v777, %v779
      %v785 = vsel %vm404, %v779, %v781
      %792 = vrot.lane.b32.xlu0 %v758, 126
      %v793 = vpop.permute.xlu0 %792
      %794 = vrot.lane.b32.xlu0 %v759, 126
      %v795 = vpop.permute.xlu0 %794
      %796 = vrot.lane.b32.xlu0 %v760, 126
      %v797 = vpop.permute.xlu0 %796
      %798 = vrot.lane.b32.xlu0 %v761, 126
      %v799 = vpop.permute.xlu0 %798
      %800 = vrot.lane.b32.xlu0 %v762, 126
      %v801 = vpop.permute.xlu0 %800
      %802 = vrot.lane.b32.xlu0 %v763, 126
      %v803 = vpop.permute.xlu0 %802
      %v804 = vsel %vm427, %v793, %v795
      %v805 = vsel %vm427, %v795, %v797
      %v806 = vsel %vm427, %v799, %v801
      %v807 = vsel %vm427, %v801, %v803
      %814 = vrot.lane.b32.xlu0 %v758, 110
      %v815 = vpop.permute.xlu0 %814
      %816 = vrot.lane.b32.xlu0 %v759, 110
      %v817 = vpop.permute.xlu0 %816
      %818 = vrot.lane.b32.xlu0 %v760, 110
      %v819 = vpop.permute.xlu0 %818
      %820 = vrot.lane.b32.xlu0 %v761, 110
      %v821 = vpop.permute.xlu0 %820
      %822 = vrot.lane.b32.xlu0 %v762, 110
      %v823 = vpop.permute.xlu0 %822
      %824 = vrot.lane.b32.xlu0 %v763, 110
      %v825 = vpop.permute.xlu0 %824
      %v826 = vsel %vm450, %v815, %v817
      %v827 = vsel %vm450, %v817, %v819
      %v828 = vsel %vm450, %v821, %v823
      %v829 = vsel %vm450, %v823, %v825
      %836 = vrot.lane.b32.xlu0 %v758, 109
      %v837 = vpop.permute.xlu0 %836
      %838 = vrot.lane.b32.xlu0 %v759, 109
      %v839 = vpop.permute.xlu0 %838
      %840 = vrot.lane.b32.xlu0 %v760, 109
      %v841 = vpop.permute.xlu0 %840
      %842 = vrot.lane.b32.xlu0 %v761, 109
      %v843 = vpop.permute.xlu0 %842
      %844 = vrot.lane.b32.xlu0 %v762, 109
      %v845 = vpop.permute.xlu0 %844
      %846 = vrot.lane.b32.xlu0 %v763, 109
      %v847 = vpop.permute.xlu0 %846
      %v848 = vsel %vm473, %v837, %v839
      %v849 = vsel %vm473, %v839, %v841
      %v850 = vsel %vm473, %v843, %v845
      %v851 = vsel %vm473, %v845, %v847
      %858 = vrot.lane.b32.xlu0 %v758, 108
      %v859 = vpop.permute.xlu0 %858
      %860 = vrot.lane.b32.xlu0 %v759, 108
      %v861 = vpop.permute.xlu0 %860
      %862 = vrot.lane.b32.xlu0 %v760, 108
      %v863 = vpop.permute.xlu0 %862
      %864 = vrot.lane.b32.xlu0 %v761, 108
      %v865 = vpop.permute.xlu0 %864
      %866 = vrot.lane.b32.xlu0 %v762, 108
      %v867 = vpop.permute.xlu0 %866
      %868 = vrot.lane.b32.xlu0 %v763, 108
      %v869 = vpop.permute.xlu0 %868
      %v870 = vsel %vm496, %v859, %v861
      %v871 = vsel %vm496, %v861, %v863
      %v872 = vsel %vm496, %v865, %v867
      %v873 = vsel %vm496, %v867, %v869
      %880 = vrot.lane.b32.xlu0 %v758, 92
      %v881 = vpop.permute.xlu0 %880
      %882 = vrot.lane.b32.xlu0 %v759, 92
      %v883 = vpop.permute.xlu0 %882
      %884 = vrot.lane.b32.xlu0 %v760, 92
      %v885 = vpop.permute.xlu0 %884
      %886 = vrot.lane.b32.xlu0 %v761, 92
      %v887 = vpop.permute.xlu0 %886
      %888 = vrot.lane.b32.xlu0 %v762, 92
      %v889 = vpop.permute.xlu0 %888
      %890 = vrot.lane.b32.xlu0 %v763, 92
      %v891 = vpop.permute.xlu0 %890
      %v892 = vsel %vm519, %v881, %v883
      %v893 = vsel %vm519, %v883, %v885
      %v894 = vsel %vm519, %v887, %v889
      %v895 = vsel %vm519, %v889, %v891
      %902 = vrot.lane.b32.xlu0 %v758, 91
      %v903 = vpop.permute.xlu0 %902
      %904 = vrot.lane.b32.xlu0 %v759, 91
      %v905 = vpop.permute.xlu0 %904
      %906 = vrot.lane.b32.xlu0 %v760, 91
      %v907 = vpop.permute.xlu0 %906
      %908 = vrot.lane.b32.xlu0 %v761, 91
      %v909 = vpop.permute.xlu0 %908
      %910 = vrot.lane.b32.xlu0 %v762, 91
      %v911 = vpop.permute.xlu0 %910
      %912 = vrot.lane.b32.xlu0 %v763, 91
      %v913 = vpop.permute.xlu0 %912
      %v914 = vsel %vm542, %v903, %v905
      %v915 = vsel %vm542, %v905, %v907
      %v916 = vsel %vm542, %v909, %v911
      %v917 = vsel %vm542, %v911, %v913
      %924 = vrot.lane.b32.xlu0 %v758, 90
      %v925 = vpop.permute.xlu0 %924
      %926 = vrot.lane.b32.xlu0 %v759, 90
      %v927 = vpop.permute.xlu0 %926
      %928 = vrot.lane.b32.xlu0 %v760, 90
      %v929 = vpop.permute.xlu0 %928
      %930 = vrot.lane.b32.xlu0 %v761, 90
      %v931 = vpop.permute.xlu0 %930
      %932 = vrot.lane.b32.xlu0 %v762, 90
      %v933 = vpop.permute.xlu0 %932
      %934 = vrot.lane.b32.xlu0 %v763, 90
      %v935 = vpop.permute.xlu0 %934
      %v936 = vsel %vm565, %v925, %v927
      %v937 = vsel %vm565, %v927, %v929
      %v938 = vsel %vm565, %v931, %v933
      %v939 = vsel %vm565, %v933, %v935
      %s946 = scalar_lea.vmem %s1, 8
      %v947 = vld [vmem:[%s946] sm:$0xff]
      %s948 = scalar_lea.vmem %s2, 4
      %v949 = vld [vmem:[%s948] sm:$0xf]
      %951 = vset.pattern.permute.xlu0 0
      %952 = vperm.xlu0 %951, %v949
      %v953 = vpop.permute.xlu0 %952
      %v956 = vcombine.high %v947, %v947
      %v957 = vsel %vm585, %v956, 0
      %959 = vmatprep.subr.mxu0 %v759
      %960 = vmatpush1.msra.mxu0 %v758
      %961 = vmatprep.subr.mxu0 %v762
      %962 = vmatpush1.msra.mxu0 %v761
      %963 = vmatprep.subr.mxu0 %v783
      %964 = vmatpush1.msra.mxu0 %v782
      %965 = vmatprep.subr.mxu0 %v785
      %966 = vmatpush1.msra.mxu0 %v784
      %967 = vmatprep.subr.mxu0 %v805
      %968 = vmatpush1.msra.mxu0 %v804
      %969 = vmatprep.subr.mxu0 %v807
      %970 = vmatpush1.msra.mxu0 %v806
      %971 = vmatprep.subr.mxu0 %v827
      %972 = vmatpush1.msra.mxu0 %v826
      %973 = vmatprep.subr.mxu0 %v829
      %974 = vmatpush1.msra.mxu0 %v828
      %975 = vmatprep.subr.mxu0 %v849
      %976 = vmatpush1.msra.mxu0 %v848
      %977 = vmatprep.subr.mxu0 %v851
      %978 = vmatpush1.msra.mxu0 %v850
      %979 = vmatprep.subr.mxu0 %v871
      %980 = vmatpush1.msra.mxu0 %v870
      %981 = vmatprep.subr.mxu0 %v873
      %982 = vmatpush1.msra.mxu0 %v872
      %983 = vmatprep.subr.mxu0 %v893
      %984 = vmatpush1.msra.mxu0 %v892
      %985 = vmatprep.subr.mxu0 %v895
      %986 = vmatpush1.msra.mxu0 %v894
      %987 = vmatprep.subr.mxu0 %v915
      %988 = vmatpush1.msra.mxu0 %v914
      %989 = vmatprep.subr.mxu0 %v917
      %990 = vmatpush1.msra.mxu0 %v916
      %991 = vmatprep.subr.mxu0 %v937
      %992 = vmatpush1.msra.mxu0 %v936
      %993 = vmatprep.subr.mxu0 %v939
      %994 = vmatpush1.msra.mxu0 %v938
      %995 = vmatprep.subr.mxu0 0.0
      %996 = vmatpush1.msra.mxu0 0.0
      %997 = vmatprep.subr.mxu0 0.0
      %998 = vmatpush1.msra.mxu0 0.0
      %999 = vmatprep.subr.mxu0 0.0
      %1000 = vmatpush1.msra.mxu0 0.0
      %1001 = vmatprep.subr.mxu0 0.0
      %1002 = vmatpush1.msra.mxu0 0.0
      %1003 = vmatprep.subr.mxu0 0.0
      %1004 = vmatpush1.msra.mxu0 0.0
      %1005 = vmatprep.subr.mxu0 0.0
      %1006 = vmatpush1.msra.mxu0 0.0
      %1007 = vmatprep.subr.mxu0 0.0
      %1008 = vmatpush1.msra.mxu0 0.0
      %1009 = vmatprep.subr.mxu0 0.0
      %1010 = vmatpush1.msra.mxu0 0.0
      %1011 = vmatprep.subr.mxu0 0.0
      %1012 = vmatpush1.msra.mxu0 0.0
      %1013 = vmatprep.subr.mxu0 0.0
      %1014 = vmatpush1.msra.mxu0 0.0
      %1015 = vmatprep.subr.mxu0 0.0
      %1016 = vmatpush1.msra.mxu0 0.0
      %1017 = vmatprep.subr.mxu0 0.0
      %1018 = vmatpush1.msra.mxu0 0.0
      %1019 = vmatprep.subr.mxu0 0.0
      %1020 = vmatpush1.msra.mxu0 0.0
      %1021 = vmatprep.subr.mxu0 0.0
      %1022 = vmatpush1.msra.mxu0 0.0
      %1023 = vmatprep.mubr.f32.mxu0 %v957
      %1024 = vmatmul.mubr.f32.gmra.mrb[0].mxu0 %v947
      %v1025 = vpop.f32.mrb[0].mxu0
      %v1026 = vadd.f32 %v953, %v1025
      %v1027 = vpop.f32.mrb[0].mxu0
      %v1028 = vadd.f32 %v953, %v1027
      %1029 = vdwg.mxu0
      %1030 = vmatprep.subr.mxu0 0.0
      %1031 = vmatpush1.msra.mxu0 %v760
      %1032 = vmatprep.subr.mxu0 0.0
      %1033 = vmatpush1.msra.mxu0 %v763
      %1034 = vmatprep.subr.mxu0 0.0
      %1035 = vmatpush1.msra.mxu0 %v775
      %1036 = vmatprep.subr.mxu0 0.0
      %1037 = vmatpush1.msra.mxu0 %v781
      %1038 = vmatprep.subr.mxu0 0.0
      %1039 = vmatpush1.msra.mxu0 %v797
      %1040 = vmatprep.subr.mxu0 0.0
      %1041 = vmatpush1.msra.mxu0 %v803
      %1042 = vmatprep.subr.mxu0 0.0
      %1043 = vmatpush1.msra.mxu0 %v819
      %1044 = vmatprep.subr.mxu0 0.0
      %1045 = vmatpush1.msra.mxu0 %v825
      %1046 = vmatprep.subr.mxu0 0.0
      %1047 = vmatpush1.msra.mxu0 %v841
      %1048 = vmatprep.subr.mxu0 0.0
      %1049 = vmatpush1.msra.mxu0 %v847
      %1050 = vmatprep.subr.mxu0 0.0
      %1051 = vmatpush1.msra.mxu0 %v863
      %1052 = vmatprep.subr.mxu0 0.0
      %1053 = vmatpush1.msra.mxu0 %v869
      %1054 = vmatprep.subr.mxu0 0.0
      %1055 = vmatpush1.msra.mxu0 %v885
      %1056 = vmatprep.subr.mxu0 0.0
      %1057 = vmatpush1.msra.mxu0 %v891
      %1058 = vmatprep.subr.mxu0 0.0
      %1059 = vmatpush1.msra.mxu0 %v907
      %1060 = vmatprep.subr.mxu0 0.0
      %1061 = vmatpush1.msra.mxu0 %v913
      %1062 = vmatprep.subr.mxu0 0.0
      %1063 = vmatpush1.msra.mxu0 %v929
      %1064 = vmatprep.subr.mxu0 0.0
      %1065 = vmatpush1.msra.mxu0 %v935
      %1066 = vmatprep.subr.mxu0 0.0
      %1067 = vmatpush1.msra.mxu0 0.0
      %1068 = vmatprep.subr.mxu0 0.0
      %1069 = vmatpush1.msra.mxu0 0.0
      %1070 = vmatprep.subr.mxu0 0.0
      %1071 = vmatpush1.msra.mxu0 0.0
      %1072 = vmatprep.subr.mxu0 0.0
      %1073 = vmatpush1.msra.mxu0 0.0
      %1074 = vmatprep.subr.mxu0 0.0
      %1075 = vmatpush1.msra.mxu0 0.0
      %1076 = vmatprep.subr.mxu0 0.0
      %1077 = vmatpush1.msra.mxu0 0.0
      %1078 = vmatprep.subr.mxu0 0.0
      %1079 = vmatpush1.msra.mxu0 0.0
      %1080 = vmatprep.subr.mxu0 0.0
      %1081 = vmatpush1.msra.mxu0 0.0
      %1082 = vmatprep.subr.mxu0 0.0
      %1083 = vmatpush1.msra.mxu0 0.0
      %1084 = vmatprep.subr.mxu0 0.0
      %1085 = vmatpush1.msra.mxu0 0.0
      %1086 = vmatprep.subr.mxu0 0.0
      %1087 = vmatpush1.msra.mxu0 0.0
      %1088 = vmatprep.subr.mxu0 0.0
      %1089 = vmatpush1.msra.mxu0 0.0
      %1090 = vmatprep.subr.mxu0 0.0
      %1091 = vmatpush1.msra.mxu0 0.0
      %1092 = vmatprep.subr.mxu0 0.0
      %1093 = vmatpush1.msra.mxu0 0.0
      %1094 = vmatprep.mubr.f32.mxu0 %v957
      %1095 = vmatmul.mubr.f32.gmra.mrb[0].mxu0 %v947
      %v1096 = vpop.f32.mrb[0].mxu0
      %v1097 = vadd.f32 %v953, %v1096
      %v1098 = vpop.f32.mrb[0].mxu0
      %1099 = vdwg.mxu0
      %v1100 = vmax.f32 %v1026, 0.0
      %v1101 = vmax.f32 %v1028, 0.0
      %v1102 = vmax.f32 %v1097, 0.0
      %v1103 = vmul.f32 %v1100, %v377
      %v1104 = vmul.f32 %v1101, %v378
      %v1105 = vmul.f32 %v1102, %v379
      %1109 = vrot.lane.b32.xlu0 %v1103, 19
      %v1110 = vpop.permute.xlu0 %1109
      %1111 = vrot.lane.b32.xlu0 %v1104, 19
      %v1112 = vpop.permute.xlu0 %1111
      %1113 = vrot.lane.b32.xlu0 %v1105, 19
      %v1114 = vpop.permute.xlu0 %1113
      %v1115 = vsel %vm747, %v1110, %v1112
      %v1116 = vsel %vm747, %v1112, %v1114
      %vm1120 = vcmask 1043608
      %1121 = vst.msk [vmem:[#allocation2 + $0x18] sm:$0xf] %vm1120, %v1110
      %1122 = vst [vmem:[#allocation2 + $0x20] sm:$0xf] %v1115
      %vm1123 = vcmask 396288
      %1124 = vst.msk [vmem:[#allocation2 + $0x28] sm:$0xf] %vm1123, %v1116
      %v1125 = vld [vmem:[#allocation2] sm:$0xff]
      %v1126 = vld [vmem:[#allocation2 + $0x8] sm:$0xff]
      %v1127 = vld [vmem:[#allocation2 + $0x10] sm:$0xff]
      %v1128 = vld [vmem:[#allocation2 + $0x18] sm:$0xff]
      %v1129 = vld [vmem:[#allocation2 + $0x20] sm:$0xff]
      %v1130 = vld [vmem:[#allocation2 + $0x28] sm:$0xff]
      %1137 = vrot.lane.b32.xlu0 %v1125, 127
      %v1138 = vpop.permute.xlu0 %1137
      %1139 = vrot.lane.b32.xlu0 %v1126, 127
      %v1140 = vpop.permute.xlu0 %1139
      %1141 = vrot.lane.b32.xlu0 %v1127, 127
      %v1142 = vpop.permute.xlu0 %1141
      %1143 = vrot.lane.b32.xlu0 %v1128, 127
      %v1144 = vpop.permute.xlu0 %1143
      %1145 = vrot.lane.b32.xlu0 %v1129, 127
      %v1146 = vpop.permute.xlu0 %1145
      %1147 = vrot.lane.b32.xlu0 %v1130, 127
      %v1148 = vpop.permute.xlu0 %1147
      %v1149 = vsel %vm404, %v1138, %v1140
      %v1150 = vsel %vm404, %v1140, %v1142
      %v1151 = vsel %vm404, %v1144, %v1146
      %v1152 = vsel %vm404, %v1146, %v1148
      %1159 = vrot.lane.b32.xlu0 %v1125, 126
      %v1160 = vpop.permute.xlu0 %1159
      %1161 = vrot.lane.b32.xlu0 %v1126, 126
      %v1162 = vpop.permute.xlu0 %1161
      %1163 = vrot.lane.b32.xlu0 %v1127, 126
      %v1164 = vpop.permute.xlu0 %1163
      %1165 = vrot.lane.b32.xlu0 %v1128, 126
      %v1166 = vpop.permute.xlu0 %1165
      %1167 = vrot.lane.b32.xlu0 %v1129, 126
      %v1168 = vpop.permute.xlu0 %1167
      %1169 = vrot.lane.b32.xlu0 %v1130, 126
      %v1170 = vpop.permute.xlu0 %1169
      %v1171 = vsel %vm427, %v1160, %v1162
      %v1172 = vsel %vm427, %v1162, %v1164
      %v1173 = vsel %vm427, %v1166, %v1168
      %v1174 = vsel %vm427, %v1168, %v1170
      %1181 = vrot.lane.b32.xlu0 %v1125, 110
      %v1182 = vpop.permute.xlu0 %1181
      %1183 = vrot.lane.b32.xlu0 %v1126, 110
      %v1184 = vpop.permute.xlu0 %1183
      %1185 = vrot.lane.b32.xlu0 %v1127, 110
      %v1186 = vpop.permute.xlu0 %1185
      %1187 = vrot.lane.b32.xlu0 %v1128, 110
      %v1188 = vpop.permute.xlu0 %1187
      %1189 = vrot.lane.b32.xlu0 %v1129, 110
      %v1190 = vpop.permute.xlu0 %1189
      %1191 = vrot.lane.b32.xlu0 %v1130, 110
      %v1192 = vpop.permute.xlu0 %1191
      %v1193 = vsel %vm450, %v1182, %v1184
      %v1194 = vsel %vm450, %v1184, %v1186
      %v1195 = vsel %vm450, %v1188, %v1190
      %v1196 = vsel %vm450, %v1190, %v1192
      %1203 = vrot.lane.b32.xlu0 %v1125, 109
      %v1204 = vpop.permute.xlu0 %1203
      %1205 = vrot.lane.b32.xlu0 %v1126, 109
      %v1206 = vpop.permute.xlu0 %1205
      %1207 = vrot.lane.b32.xlu0 %v1127, 109
      %v1208 = vpop.permute.xlu0 %1207
      %1209 = vrot.lane.b32.xlu0 %v1128, 109
      %v1210 = vpop.permute.xlu0 %1209
      %1211 = vrot.lane.b32.xlu0 %v1129, 109
      %v1212 = vpop.permute.xlu0 %1211
      %1213 = vrot.lane.b32.xlu0 %v1130, 109
      %v1214 = vpop.permute.xlu0 %1213
      %v1215 = vsel %vm473, %v1204, %v1206
      %v1216 = vsel %vm473, %v1206, %v1208
      %v1217 = vsel %vm473, %v1210, %v1212
      %v1218 = vsel %vm473, %v1212, %v1214
      %1225 = vrot.lane.b32.xlu0 %v1125, 108
      %v1226 = vpop.permute.xlu0 %1225
      %1227 = vrot.lane.b32.xlu0 %v1126, 108
      %v1228 = vpop.permute.xlu0 %1227
      %1229 = vrot.lane.b32.xlu0 %v1127, 108
      %v1230 = vpop.permute.xlu0 %1229
      %1231 = vrot.lane.b32.xlu0 %v1128, 108
      %v1232 = vpop.permute.xlu0 %1231
      %1233 = vrot.lane.b32.xlu0 %v1129, 108
      %v1234 = vpop.permute.xlu0 %1233
      %1235 = vrot.lane.b32.xlu0 %v1130, 108
      %v1236 = vpop.permute.xlu0 %1235
      %v1237 = vsel %vm496, %v1226, %v1228
      %v1238 = vsel %vm496, %v1228, %v1230
      %v1239 = vsel %vm496, %v1232, %v1234
      %v1240 = vsel %vm496, %v1234, %v1236
      %1247 = vrot.lane.b32.xlu0 %v1125, 92
      %v1248 = vpop.permute.xlu0 %1247
      %1249 = vrot.lane.b32.xlu0 %v1126, 92
      %v1250 = vpop.permute.xlu0 %1249
      %1251 = vrot.lane.b32.xlu0 %v1127, 92
      %v1252 = vpop.permute.xlu0 %1251
      %1253 = vrot.lane.b32.xlu0 %v1128, 92
      %v1254 = vpop.permute.xlu0 %1253
      %1255 = vrot.lane.b32.xlu0 %v1129, 92
      %v1256 = vpop.permute.xlu0 %1255
      %1257 = vrot.lane.b32.xlu0 %v1130, 92
      %v1258 = vpop.permute.xlu0 %1257
      %v1259 = vsel %vm519, %v1248, %v1250
      %v1260 = vsel %vm519, %v1250, %v1252
      %v1261 = vsel %vm519, %v1254, %v1256
      %v1262 = vsel %vm519, %v1256, %v1258
      %1269 = vrot.lane.b32.xlu0 %v1125, 91
      %v1270 = vpop.permute.xlu0 %1269
      %1271 = vrot.lane.b32.xlu0 %v1126, 91
      %v1272 = vpop.permute.xlu0 %1271
      %1273 = vrot.lane.b32.xlu0 %v1127, 91
      %v1274 = vpop.permute.xlu0 %1273
      %1275 = vrot.lane.b32.xlu0 %v1128, 91
      %v1276 = vpop.permute.xlu0 %1275
      %1277 = vrot.lane.b32.xlu0 %v1129, 91
      %v1278 = vpop.permute.xlu0 %1277
      %1279 = vrot.lane.b32.xlu0 %v1130, 91
      %v1280 = vpop.permute.xlu0 %1279
      %v1281 = vsel %vm542, %v1270, %v1272
      %v1282 = vsel %vm542, %v1272, %v1274
      %v1283 = vsel %vm542, %v1276, %v1278
      %v1284 = vsel %vm542, %v1278, %v1280
      %1291 = vrot.lane.b32.xlu0 %v1125, 90
      %v1292 = vpop.permute.xlu0 %1291
      %1293 = vrot.lane.b32.xlu0 %v1126, 90
      %v1294 = vpop.permute.xlu0 %1293
      %1295 = vrot.lane.b32.xlu0 %v1127, 90
      %v1296 = vpop.permute.xlu0 %1295
      %1297 = vrot.lane.b32.xlu0 %v1128, 90
      %v1298 = vpop.permute.xlu0 %1297
      %1299 = vrot.lane.b32.xlu0 %v1129, 90
      %v1300 = vpop.permute.xlu0 %1299
      %1301 = vrot.lane.b32.xlu0 %v1130, 90
      %v1302 = vpop.permute.xlu0 %1301
      %v1303 = vsel %vm565, %v1292, %v1294
      %v1304 = vsel %vm565, %v1294, %v1296
      %v1305 = vsel %vm565, %v1298, %v1300
      %v1306 = vsel %vm565, %v1300, %v1302
      %s1313 = scalar_lea.vmem %s1, 16
      %v1314 = vld [vmem:[%s1313] sm:$0xff]
      %s1315 = scalar_lea.vmem %s2, 8
      %v1316 = vld [vmem:[%s1315] sm:$0xf]
      %1318 = vset.pattern.permute.xlu0 0
      %1319 = vperm.xlu0 %1318, %v1316
      %v1320 = vpop.permute.xlu0 %1319
      %v1323 = vcombine.high %v1314, %v1314
      %v1324 = vsel %vm585, %v1323, 0
      %1326 = vmatprep.subr.mxu0 %v1126
      %1327 = vmatpush1.msra.mxu0 %v1125
      %1328 = vmatprep.subr.mxu0 %v1129
      %1329 = vmatpush1.msra.mxu0 %v1128
      %1330 = vmatprep.subr.mxu0 %v1150
      %1331 = vmatpush1.msra.mxu0 %v1149
      %1332 = vmatprep.subr.mxu0 %v1152
      %1333 = vmatpush1.msra.mxu0 %v1151
      %1334 = vmatprep.subr.mxu0 %v1172
      %1335 = vmatpush1.msra.mxu0 %v1171
      %1336 = vmatprep.subr.mxu0 %v1174
      %1337 = vmatpush1.msra.mxu0 %v1173
      %1338 = vmatprep.subr.mxu0 %v1194
      %1339 = vmatpush1.msra.mxu0 %v1193
      %1340 = vmatprep.subr.mxu0 %v1196
      %1341 = vmatpush1.msra.mxu0 %v1195
      %1342 = vmatprep.subr.mxu0 %v1216
      %1343 = vmatpush1.msra.mxu0 %v1215
      %1344 = vmatprep.subr.mxu0 %v1218
      %1345 = vmatpush1.msra.mxu0 %v1217
      %1346 = vmatprep.subr.mxu0 %v1238
      %1347 = vmatpush1.msra.mxu0 %v1237
      %1348 = vmatprep.subr.mxu0 %v1240
      %1349 = vmatpush1.msra.mxu0 %v1239
      %1350 = vmatprep.subr.mxu0 %v1260
      %1351 = vmatpush1.msra.mxu0 %v1259
      %1352 = vmatprep.subr.mxu0 %v1262
      %1353 = vmatpush1.msra.mxu0 %v1261
      %1354 = vmatprep.subr.mxu0 %v1282
      %1355 = vmatpush1.msra.mxu0 %v1281
      %1356 = vmatprep.subr.mxu0 %v1284
      %1357 = vmatpush1.msra.mxu0 %v1283
      %1358 = vmatprep.subr.mxu0 %v1304
      %1359 = vmatpush1.msra.mxu0 %v1303
      %1360 = vmatprep.subr.mxu0 %v1306
      %1361 = vmatpush1.msra.mxu0 %v1305
      %1362 = vmatprep.subr.mxu0 0.0
      %1363 = vmatpush1.msra.mxu0 0.0
      %1364 = vmatprep.subr.mxu0 0.0
      %1365 = vmatpush1.msra.mxu0 0.0
      %1366 = vmatprep.subr.mxu0 0.0
      %1367 = vmatpush1.msra.mxu0 0.0
      %1368 = vmatprep.subr.mxu0 0.0
      %1369 = vmatpush1.msra.mxu0 0.0
      %1370 = vmatprep.subr.mxu0 0.0
      %1371 = vmatpush1.msra.mxu0 0.0
      %1372 = vmatprep.subr.mxu0 0.0
      %1373 = vmatpush1.msra.mxu0 0.0
      %1374 = vmatprep.subr.mxu0 0.0
      %1375 = vmatpush1.msra.mxu0 0.0
      %1376 = vmatprep.subr.mxu0 0.0
      %1377 = vmatpush1.msra.mxu0 0.0
      %1378 = vmatprep.subr.mxu0 0.0
      %1379 = vmatpush1.msra.mxu0 0.0
      %1380 = vmatprep.subr.mxu0 0.0
      %1381 = vmatpush1.msra.mxu0 0.0
      %1382 = vmatprep.subr.mxu0 0.0
      %1383 = vmatpush1.msra.mxu0 0.0
      %1384 = vmatprep.subr.mxu0 0.0
      %1385 = vmatpush1.msra.mxu0 0.0
      %1386 = vmatprep.subr.mxu0 0.0
      %1387 = vmatpush1.msra.mxu0 0.0
      %1388 = vmatprep.subr.mxu0 0.0
      %1389 = vmatpush1.msra.mxu0 0.0
      %1390 = vmatprep.mubr.f32.mxu0 %v1324
      %1391 = vmatmul.mubr.f32.gmra.mrb[0].mxu0 %v1314
      %v1392 = vpop.f32.mrb[0].mxu0
      %v1393 = vadd.f32 %v1320, %v1392
      %v1394 = vpop.f32.mrb[0].mxu0
      %v1395 = vadd.f32 %v1320, %v1394
      %1396 = vdwg.mxu0
      %1397 = vmatprep.subr.mxu0 0.0
      %1398 = vmatpush1.msra.mxu0 %v1127
      %1399 = vmatprep.subr.mxu0 0.0
      %1400 = vmatpush1.msra.mxu0 %v1130
      %1401 = vmatprep.subr.mxu0 0.0
      %1402 = vmatpush1.msra.mxu0 %v1142
      %1403 = vmatprep.subr.mxu0 0.0
      %1404 = vmatpush1.msra.mxu0 %v1148
      %1405 = vmatprep.subr.mxu0 0.0
      %1406 = vmatpush1.msra.mxu0 %v1164
      %1407 = vmatprep.subr.mxu0 0.0
      %1408 = vmatpush1.msra.mxu0 %v1170
      %1409 = vmatprep.subr.mxu0 0.0
      %1410 = vmatpush1.msra.mxu0 %v1186
      %1411 = vmatprep.subr.mxu0 0.0
      %1412 = vmatpush1.msra.mxu0 %v1192
      %1413 = vmatprep.subr.mxu0 0.0
      %1414 = vmatpush1.msra.mxu0 %v1208
      %1415 = vmatprep.subr.mxu0 0.0
      %1416 = vmatpush1.msra.mxu0 %v1214
      %1417 = vmatprep.subr.mxu0 0.0
      %1418 = vmatpush1.msra.mxu0 %v1230
      %1419 = vmatprep.subr.mxu0 0.0
      %1420 = vmatpush1.msra.mxu0 %v1236
      %1421 = vmatprep.subr.mxu0 0.0
      %1422 = vmatpush1.msra.mxu0 %v1252
      %1423 = vmatprep.subr.mxu0 0.0
      %1424 = vmatpush1.msra.mxu0 %v1258
      %1425 = vmatprep.subr.mxu0 0.0
      %1426 = vmatpush1.msra.mxu0 %v1274
      %1427 = vmatprep.subr.mxu0 0.0
      %1428 = vmatpush1.msra.mxu0 %v1280
      %1429 = vmatprep.subr.mxu0 0.0
      %1430 = vmatpush1.msra.mxu0 %v1296
      %1431 = vmatprep.subr.mxu0 0.0
      %1432 = vmatpush1.msra.mxu0 %v1302
      %1433 = vmatprep.subr.mxu0 0.0
      %1434 = vmatpush1.msra.mxu0 0.0
      %1435 = vmatprep.subr.mxu0 0.0
      %1436 = vmatpush1.msra.mxu0 0.0
      %1437 = vmatprep.subr.mxu0 0.0
      %1438 = vmatpush1.msra.mxu0 0.0
      %1439 = vmatprep.subr.mxu0 0.0
      %1440 = vmatpush1.msra.mxu0 0.0
      %1441 = vmatprep.subr.mxu0 0.0
      %1442 = vmatpush1.msra.mxu0 0.0
      %1443 = vmatprep.subr.mxu0 0.0
      %1444 = vmatpush1.msra.mxu0 0.0
      %1445 = vmatprep.subr.mxu0 0.0
      %1446 = vmatpush1.msra.mxu0 0.0
      %1447 = vmatprep.subr.mxu0 0.0
      %1448 = vmatpush1.msra.mxu0 0.0
      %1449 = vmatprep.subr.mxu0 0.0
      %1450 = vmatpush1.msra.mxu0 0.0
      %1451 = vmatprep.subr.mxu0 0.0
      %1452 = vmatpush1.msra.mxu0 0.0
      %1453 = vmatprep.subr.mxu0 0.0
      %1454 = vmatpush1.msra.mxu0 0.0
      %1455 = vmatprep.subr.mxu0 0.0
      %1456 = vmatpush1.msra.mxu0 0.0
      %1457 = vmatprep.subr.mxu0 0.0
      %1458 = vmatpush1.msra.mxu0 0.0
      %1459 = vmatprep.subr.mxu0 0.0
      %1460 = vmatpush1.msra.mxu0 0.0
      %1461 = vmatprep.mubr.f32.mxu0 %v1324
      %1462 = vmatmul.mubr.f32.gmra.mrb[0].mxu0 %v1314
      %v1463 = vpop.f32.mrb[0].mxu0
      %v1464 = vadd.f32 %v1320, %v1463
      %v1465 = vpop.f32.mrb[0].mxu0
      %1466 = vdwg.mxu0
      %v1467 = vmax.f32 %v1393, 0.0
      %v1468 = vmax.f32 %v1395, 0.0
      %v1469 = vmax.f32 %v1464, 0.0
      %v1470 = vmul.f32 %v1467, %v377
      %v1471 = vmul.f32 %v1468, %v378
      %v1472 = vmul.f32 %v1469, %v379
      %v1476 = vrot.slane %v1470, 4
      %v1477 = vrot.slane %v1471, 4
      %v1478 = vrot.slane %v1472, 4
      %1479 = vrot.lane.b32.xlu0 %v1476, 19
      %v1480 = vpop.permute.xlu0 %1479
      %1481 = vrot.lane.b32.xlu0 %v1477, 19
      %v1482 = vpop.permute.xlu0 %1481
      %1483 = vrot.lane.b32.xlu0 %v1478, 19
      %v1484 = vpop.permute.xlu0 %1483
      %v1485 = vsel %vm747, %v1480, %v1482
      %v1486 = vsel %vm747, %v1482, %v1484
      %1490 = vst.msk [vmem:[#allocation2 + $0x18] sm:$0xf0] %vm753, %v1480
      %1491 = vst [vmem:[#allocation2 + $0x20] sm:$0xf0] %v1485
      %1492 = vst.msk [vmem:[#allocation2 + $0x28] sm:$0xf0] %vm756, %v1486
      %v1493 = vld [vmem:[#allocation2] sm:$0xff]
      %v1494 = vld [vmem:[#allocation2 + $0x18] sm:$0xff]
      %1497 = vrot.lane.b32.xlu0 %v1493, 109
      %v1498 = vpop.permute.xlu0 %1497
      %1499 = vrot.lane.b32.xlu0 %v1494, 109
      %v1500 = vpop.permute.xlu0 %1499
      %1503 = vst.msk [vmem:[#allocation3] sm:$0xff] %vm585, %v1498
      %1504 = vst.msk [vmem:[#allocation3 + $0x10] sm:$0xff] %vm585, %v1500
      %v1505 = vld [vmem:[#allocation2] sm:$0xff]
      %v1506 = vld [vmem:[#allocation2 + $0x18] sm:$0xff]
      %1509 = vrot.lane.b32.xlu0 %v1505, 107
      %v1510 = vpop.permute.xlu0 %1509
      %1511 = vrot.lane.b32.xlu0 %v1506, 107
      %v1512 = vpop.permute.xlu0 %1511
      %vm1515 = vcmask 261248
      %1516 = vst.msk [vmem:[#allocation3] sm:$0xff] %vm1515, %v1510
      %1517 = vst.msk [vmem:[#allocation3 + $0x10] sm:$0xff] %vm1515, %v1512
      %v1518 = vld [vmem:[#allocation2] sm:$0xff]
      %v1519 = vld [vmem:[#allocation2 + $0x18] sm:$0xff]
      %1522 = vrot.lane.b32.xlu0 %v1518, 105
      %v1523 = vpop.permute.xlu0 %1522
      %1524 = vrot.lane.b32.xlu0 %v1519, 105
      %v1525 = vpop.permute.xlu0 %1524
      %vm1528 = vcmask 392448
      %1529 = vst.msk [vmem:[#allocation3] sm:$0xff] %vm1528, %v1523
      %1530 = vst.msk [vmem:[#allocation3 + $0x10] sm:$0xff] %vm1528, %v1525
      %v1531 = vld [vmem:[#allocation2] sm:$0xff]
      %v1532 = vld [vmem:[#allocation2 + $0x18] sm:$0xff]
      %1535 = vrot.lane.b32.xlu0 %v1531, 103
      %v1536 = vpop.permute.xlu0 %1535
      %1537 = vrot.lane.b32.xlu0 %v1532, 103
      %v1538 = vpop.permute.xlu0 %1537
      %vm1541 = vcmask 523648
      %1542 = vst.msk [vmem:[#allocation3] sm:$0xff] %vm1541, %v1536
      %1543 = vst.msk [vmem:[#allocation3 + $0x10] sm:$0xff] %vm1541, %v1538
      %v1544 = vld [vmem:[#allocation2] sm:$0xff]
      %v1545 = vld [vmem:[#allocation2 + $0x18] sm:$0xff]
      %1548 = vrot.lane.b32.xlu0 %v1544, 101
      %v1549 = vpop.permute.xlu0 %1548
      %1550 = vrot.lane.b32.xlu0 %v1545, 101
      %v1551 = vpop.permute.xlu0 %1550
      %vm1554 = vcmask 654848
      %1555 = vst.msk [vmem:[#allocation3] sm:$0xff] %vm1554, %v1549
      %1556 = vst.msk [vmem:[#allocation3 + $0x10] sm:$0xff] %vm1554, %v1551
      %v1557 = vld [vmem:[#allocation2] sm:$0xff]
      %v1558 = vld [vmem:[#allocation2 + $0x18] sm:$0xff]
      %1561 = vrot.lane.b32.xlu0 %v1557, 99
      %v1562 = vpop.permute.xlu0 %1561
      %1563 = vrot.lane.b32.xlu0 %v1558, 99
      %v1564 = vpop.permute.xlu0 %1563
      %vm1567 = vcmask 786048
      %1568 = vst.msk [vmem:[#allocation3] sm:$0xff] %vm1567, %v1562
      %1569 = vst.msk [vmem:[#allocation3 + $0x10] sm:$0xff] %vm1567, %v1564
      %v1570 = vld [vmem:[#allocation2] sm:$0xff]
      %v1571 = vld [vmem:[#allocation2 + $0x8] sm:$0xff]
      %v1572 = vld [vmem:[#allocation2 + $0x18] sm:$0xff]
      %v1573 = vld [vmem:[#allocation2 + $0x20] sm:$0xff]
      %1578 = vrot.lane.b32.xlu0 %v1570, 97
      %v1579 = vpop.permute.xlu0 %1578
      %1580 = vrot.lane.b32.xlu0 %v1571, 97
      %v1581 = vpop.permute.xlu0 %1580
      %1582 = vrot.lane.b32.xlu0 %v1572, 97
      %v1583 = vpop.permute.xlu0 %1582
      %1584 = vrot.lane.b32.xlu0 %v1573, 97
      %v1585 = vpop.permute.xlu0 %1584
      %vm1586 = vcmask 793600
      %v1587 = vsel %vm1586, %v1579, %v1581
      %v1588 = vsel %vm1586, %v1583, %v1585
      %vm1591 = vcmask 917248
      %1592 = vst.msk [vmem:[#allocation3] sm:$0xff] %vm1591, %v1587
      %1593 = vst.msk [vmem:[#allocation3 + $0x10] sm:$0xff] %vm1591, %v1588
      %v1594 = vld [vmem:[#allocation2 + $0x8] sm:$0xff]
      %v1595 = vld [vmem:[#allocation2 + $0x20] sm:$0xff]
      %1598 = vrot.lane.b32.xlu0 %v1594, 95
      %v1599 = vpop.permute.xlu0 %1598
      %1600 = vrot.lane.b32.xlu0 %v1595, 95
      %v1601 = vpop.permute.xlu0 %1600
      %vm1604 = vcmask 1048448
      %1605 = vst.msk [vmem:[#allocation3] sm:$0xff] %vm1604, %v1599
      %1606 = vst.msk [vmem:[#allocation3 + $0x10] sm:$0xff] %vm1604, %v1601
      %v1607 = vld [vmem:[#allocation2 + $0x8] sm:$0xff]
      %v1608 = vld [vmem:[#allocation2 + $0x20] sm:$0xff]
      %1611 = vrot.lane.b32.xlu0 %v1607, 93
      %v1612 = vpop.permute.xlu0 %1611
      %1613 = vrot.lane.b32.xlu0 %v1608, 93
      %v1614 = vpop.permute.xlu0 %1613
      %1617 = vst.msk [vmem:[#allocation3 + $0x8] sm:$0xff] %vm585, %v1612
      %1618 = vst.msk [vmem:[#allocation3 + $0x18] sm:$0xff] %vm585, %v1614
      %v1619 = vld [vmem:[#allocation2 + $0x8] sm:$0xff]
      %v1620 = vld [vmem:[#allocation2 + $0x20] sm:$0xff]
      %1623 = vrot.lane.b32.xlu0 %v1619, 91
      %v1624 = vpop.permute.xlu0 %1623
      %1625 = vrot.lane.b32.xlu0 %v1620, 91
      %v1626 = vpop.permute.xlu0 %1625
      %1629 = vst.msk [vmem:[#allocation3 + $0x8] sm:$0xff] %vm1515, %v1624
      %1630 = vst.msk [vmem:[#allocation3 + $0x18] sm:$0xff] %vm1515, %v1626
      %v1631 = vld [vmem:[#allocation2 + $0x8] sm:$0xff]
      %v1632 = vld [vmem:[#allocation2 + $0x20] sm:$0xff]
      %1635 = vrot.lane.b32.xlu0 %v1631, 89
      %v1636 = vpop.permute.xlu0 %1635
      %1637 = vrot.lane.b32.xlu0 %v1632, 89
      %v1638 = vpop.permute.xlu0 %1637
      %1641 = vst.msk [vmem:[#allocation3 + $0x8] sm:$0xff] %vm1528, %v1636
      %1642 = vst.msk [vmem:[#allocation3 + $0x18] sm:$0xff] %vm1528, %v1638
      %v1643 = vld [vmem:[#allocation2 + $0x8] sm:$0xff]
      %v1644 = vld [vmem:[#allocation2 + $0x20] sm:$0xff]
      %1647 = vrot.lane.b32.xlu0 %v1643, 87
      %v1648 = vpop.permute.xlu0 %1647
      %1649 = vrot.lane.b32.xlu0 %v1644, 87
      %v1650 = vpop.permute.xlu0 %1649
      %1653 = vst.msk [vmem:[#allocation3 + $0x8] sm:$0xff] %vm1541, %v1648
      %1654 = vst.msk [vmem:[#allocation3 + $0x18] sm:$0xff] %vm1541, %v1650
      %v1655 = vld [vmem:[#allocation2 + $0x8] sm:$0xff]
      %v1656 = vld [vmem:[#allocation2 + $0x20] sm:$0xff]
      %1659 = vrot.lane.b32.xlu0 %v1655, 85
      %v1660 = vpop.permute.xlu0 %1659
      %1661 = vrot.lane.b32.xlu0 %v1656, 85
      %v1662 = vpop.permute.xlu0 %1661
      %1665 = vst.msk [vmem:[#allocation3 + $0x8] sm:$0xff] %vm1554, %v1660
      %1666 = vst.msk [vmem:[#allocation3 + $0x18] sm:$0xff] %vm1554, %v1662
      %v1667 = vld [vmem:[#allocation2 + $0x8] sm:$0xff]
      %v1668 = vld [vmem:[#allocation2 + $0x10] sm:$0xff]
      %v1669 = vld [vmem:[#allocation2 + $0x20] sm:$0xff]
      %v1670 = vld [vmem:[#allocation2 + $0x28] sm:$0xff]
      %1675 = vrot.lane.b32.xlu0 %v1667, 83
      %v1676 = vpop.permute.xlu0 %1675
      %1677 = vrot.lane.b32.xlu0 %v1668, 83
      %v1678 = vpop.permute.xlu0 %1677
      %1679 = vrot.lane.b32.xlu0 %v1669, 83
      %v1680 = vpop.permute.xlu0 %1679
      %1681 = vrot.lane.b32.xlu0 %v1670, 83
      %v1682 = vpop.permute.xlu0 %1681
      %vm1683 = vcmask 678912
      %v1684 = vsel %vm1683, %v1676, %v1678
      %v1685 = vsel %vm1683, %v1680, %v1682
      %1688 = vst.msk [vmem:[#allocation3 + $0x8] sm:$0xff] %vm1567, %v1684
      %1689 = vst.msk [vmem:[#allocation3 + $0x18] sm:$0xff] %vm1567, %v1685
      %v1690 = vld [vmem:[#allocation2 + $0x10] sm:$0xff]
      %v1691 = vld [vmem:[#allocation2 + $0x28] sm:$0xff]
      %1694 = vrot.lane.b32.xlu0 %v1690, 81
      %v1695 = vpop.permute.xlu0 %1694
      %1696 = vrot.lane.b32.xlu0 %v1691, 81
      %v1697 = vpop.permute.xlu0 %1696
      %1700 = vst.msk [vmem:[#allocation3 + $0x8] sm:$0xff] %vm1591, %v1695
      %1701 = vst.msk [vmem:[#allocation3 + $0x18] sm:$0xff] %vm1591, %v1697
      %v1702 = vld [vmem:[#allocation2 + $0x10] sm:$0xff]
      %v1703 = vld [vmem:[#allocation2 + $0x28] sm:$0xff]
      %1706 = vrot.lane.b32.xlu0 %v1702, 79
      %v1707 = vpop.permute.xlu0 %1706
      %1708 = vrot.lane.b32.xlu0 %v1703, 79
      %v1709 = vpop.permute.xlu0 %1708
      %1712 = vst.msk [vmem:[#allocation3 + $0x8] sm:$0xff] %vm1604, %v1707
      %1713 = vst.msk [vmem:[#allocation3 + $0x18] sm:$0xff] %vm1604, %v1709
      %v1714 = vld [vmem:[#allocation3] sm:$0xff]
      %v1715 = vld [vmem:[#allocation3 + $0x8] sm:$0xff]
      %v1716 = vld [vmem:[#allocation3 + $0x10] sm:$0xff]
      %v1717 = vld [vmem:[#allocation3 + $0x18] sm:$0xff]
      %1718 = vst [vmem:[%s170] sm:$0xff] %v1714
      %1719 = vst [vmem:[%s170 + $0x8] sm:$0xff] %v1715
      %1720 = vst [vmem:[%s170 + $0x10] sm:$0xff] %v1716
      %1721 = vst [vmem:[%s170 + $0x18] sm:$0xff] %v1717
      %p1722 = scmp.lt.s32.totalorder %s14, 1
      %s1723 = scalar_select %p1722, %s14, 1
      %s1724 = smul.addr %s1723, 4
      %s1725 = smul.addr %s1724, 8
      %s1726 = scalar_lea.vmem %s3, %s1725
      // Predicated region
      $region33: #{dense_block_forward.1} parent=31 // pred_check
        %p1727 = pneg %p100
      $region34: #{dense_block_forward.1} parent=31 // pred_check_branch
        %1729 = sbr.rel (%p1727) target = $region36
      $region35: #{dense_block_forward.1} parent=31 // pred_region
        _
      $region36: #{dense_block_forward.1} parent=31 // pred_fallthru
        _
    $region32: #{dense_block_forward.1} parent=5 // pred_fallthru
      _
    %p1730 = scmp.le.s32.totalorder 2, %s9
    // Predicated region
    $region37: #{dense_block_forward.1} parent=5 // pred_check
      %p1731 = pneg %p1730
    $region38: #{dense_block_forward.1} parent=5 // pred_check_branch
      %1733 = sbr.rel (%p1731) target = $region40
    $region39: #{dense_block_forward.1} parent=5 // pred_region
      %s1734 = ssub.s32 %s9, 2
      // Predicated region
      $region41: #{dense_block_forward.1} parent=39 // pred_check
        %p1735 = pneg %p106
      $region42: #{dense_block_forward.1} parent=39 // pred_check_branch
        %1737 = sbr.rel (%p1735) target = $region44
      $region43: #{dense_block_forward.1} parent=39 // pred_region
        %p1738 = scmp.lt.s32.totalorder %s15, 1
        %s1739 = scalar_select %p1738, %s15, 1
        %s1740 = smul.addr %s1739, 4
        %s1741 = smul.addr %s1740, 8
        %s1742 = scalar_lea.vmem %s3, %s1741
      $region44: #{dense_block_forward.1} parent=39 // pred_fallthru
        _
    $region40: #{dense_block_forward.1} parent=5 // pred_fallthru
      _
  $region6: #{dense_block_forward.1} parent=0 // loop_footer
    %s13 = sadd.s32 1, %s9
  $region7: #{dense_block_forward.1} parent=0 // loop_footer_branch
    %8 = sbr.rel target = $region3
  $region8: #{dense_block_forward.1} parent=0 // loop_exit
    _

</llo_original>
